<compile_context>
chip_gen: v6e
topology: v6e:2x2x1
jax: 0.10.0
libtpu: 0.0.40
codegen_flags: <defaults>
</compile_context>

<pallas_src>
import functools

import jax
import jax.numpy as jnp
from jax.experimental import pallas as pl
from jax.experimental.pallas import tpu as pltpu


# ----------------------------------------------------------------------------
# Pallas kernel: one grid step == Bb batch elements, full GRU-cell update.
# ----------------------------------------------------------------------------
def _gcru_cell_kernel(*refs, K, has_meta_adj, g_batched, num_g, N, H, Bb,
                      compute_dtype):
    idx = 0
    att_ref = refs[idx]; idx += 1       # (Bb*N, N)        compute_dtype
    xh_ref = refs[idx]; idx += 1        # (Bb*N, D+H)      f32
    h_ref = refs[idx]; idx += 1         # (Bb*N, H)        f32
    madj_ref = None
    if has_meta_adj:
        madj_ref = refs[idx]; idx += 1  # (Bb*N, N)        compute_dtype
    gw_ref = None
    if num_g > 0:
        gw_ref = refs[idx]; idx += 1    # (N, num_g*N) or (Bb*N, num_g*N)
    w_ref = refs[idx]; idx += 1         # (3, K, D+H, H)   compute_dtype
    wuh_ref = refs[idx]; idx += 1       # (K, H, H)        compute_dtype
    b_ref = refs[idx]; idx += 1         # (3, 1, H)        f32
    out_ref = refs[idx]                 # (Bb*N, H)

    cd = compute_dtype
    f32 = jnp.float32
    rows = Bb * N

    def mm(a, b):
        # MXU matmul, f32 accumulation.
        return jnp.dot(a, b, preferred_element_type=f32)

    att = att_ref[...]                          # (rows, N)   cd
    xh = xh_ref[...]                            # (rows, D+H) f32
    h = h_ref[...]                              # (rows, H)   f32
    xh_cd = xh.astype(cd)                       # hoisted cast (used K*Bb times)

    w_all = w_ref[...]                          # (3, K, D+H, H)
    wuh = wuh_ref[...]                          # (K, H, H)
    b_all = b_ref[...]                          # (3, 1, H)   f32

    # ---- per-order supports S_k = att @ A_k, hoisted & reused ---------------
    # Shared Chebyshev supports: one wide matmul for the WHOLE batch block.
    s_shared = None
    if num_g > 0 and not g_batched:
        s_shared = mm(att, gw_ref[...]).astype(cd)          # (rows, num_g*N)
    madj = madj_ref[...] if has_meta_adj else None
    gwt = gw_ref[...] if (num_g > 0 and g_batched) else None

    # s_blocks[b][k] : (N, N) in compute_dtype (cast once, reused twice).
    s_blocks = [[None] * K for _ in range(Bb)]
    for b in range(Bb):
        r0 = b * N
        att_b = att[r0:r0 + N]
        kk = 0
        if has_meta_adj:
            s_blocks[b][0] = mm(att_b, madj[r0:r0 + N]).astype(cd)
            kk = 1
        if num_g > 0:
            if g_batched:
                sw_b = mm(att_b, gwt[r0:r0 + N]).astype(cd)  # (N, num_g*N)
            else:
                sw_b = s_shared[r0:r0 + N]                   # (N, num_g*N)
            for g in range(num_g):
                s_blocks[b][kk + g] = sw_b[:, g * N:(g + 1) * N]

    # ---- gate path: acc_* = sum_k (S_k @ [x|h]) @ W*_k  (stacked over b) ----
    zero = jnp.zeros((rows, H), f32)
    acc_z, acc_r, acc_u = zero, zero, zero
    for k in range(K):
        sxh_b = [mm(s_blocks[b][k], xh_cd[b * N:(b + 1) * N]) for b in range(Bb)]
        sxh = (sxh_b[0] if Bb == 1
               else jnp.concatenate(sxh_b, axis=0)).astype(cd)   # (rows, D+H)
        acc_z = acc_z + mm(sxh, w_all[0, k])
        acc_r = acc_r + mm(sxh, w_all[1, k])
        # candidate x-part: h-rows of w_all[2, k] are zeroed in the wrapper,
        # so the SAME (rows, D+H) LHS is reused without lane slicing.
        acc_u = acc_u + mm(sxh, w_all[2, k])

    z = jax.nn.sigmoid(acc_z + b_all[0])        # (rows, H) f32
    r = jax.nn.sigmoid(acc_r + b_all[1])        # (rows, H) f32
    rh = (r * h).astype(cd)                     # hoisted cast

    # ---- candidate (r*h) path: acc_u += sum_k (S_k @ (r*h)) @ Wu_h_k --------
    for k in range(K):
        srh_b = [mm(s_blocks[b][k], rh[b * N:(b + 1) * N]) for b in range(Bb)]
        srh = (srh_b[0] if Bb == 1
               else jnp.concatenate(srh_b, axis=0)).astype(cd)   # (rows, H)
        acc_u = acc_u + mm(srh, wuh[k])

    hc = jnp.tanh(acc_u + b_all[2])             # (rows, H) f32
    out_ref[...] = (z * hc + (1.0 - z) * h).astype(out_ref.dtype)


# ----------------------------------------------------------------------------
# Wrapper: parameter plumbing + pallas_call
# ----------------------------------------------------------------------------
def _pick_batch_block(B, N):
    """Aim for Bb*N >= 128 MXU rows while keeping the grid even (v7x 2 TCs)."""
    target = max(1, 128 // max(N, 1))
    divs = [d for d in range(1, B + 1) if B % d == 0]
    even_grid = [d for d in divs if (B // d) % 2 == 0]
    cands = even_grid if even_grid else divs
    under = [d for d in cands if d <= target]
    return max(under) if under else min(cands)


def stmeta_gcru_cell(G, xt, h, meta_att, meta_adj, Wg, bg, Wu, bu, cheb_k,
                     compute_dtype=jnp.float32, batch_block=None):
    """Pallas implementation of STMetaGCRUCell.forward.

    G        : (cheb_k, N, N) or (B, cheb_k, N, N)
    xt       : (B, N, D)
    h        : (B, N, H)
    meta_att : (B, N, N)
    meta_adj : (B, N, N) or None
    Wg, bg   : gate GCN params     (cheb_k*(D+H), 2H), (2H,)
    Wu, bu   : update GCN params   (cheb_k*(D+H), H),  (H,)
    compute_dtype : dtype of MXU inputs.  bf16 is the recommended fast path on
                    all TPU generations (v5e / v6e / v7x); accumulation and the
                    GRU epilogue stay f32.
    """
    B, N, D = xt.shape
    H = h.shape[-1]
    DH = D + H
    K = cheb_k
    cd = compute_dtype
    f32 = jnp.float32

    has_meta_adj = meta_adj is not None
    num_g = K - 1 if has_meta_adj else K
    g_batched = (G is not None and G.ndim == 4)

    Bb = batch_block if batch_block is not None else _pick_batch_block(B, N)
    assert B % Bb == 0, "batch_block must divide B"
    rows_blk = Bb * N
    grid = (B // Bb,)

    def bspec(ncols):
        return pl.BlockSpec((rows_blk, ncols), lambda i: (i, 0))

    # --- batch-row-major 2-D views (built once in XLA, not per grid step) ----
    att2 = meta_att.reshape(B * N, N).astype(cd)
    xh2 = jnp.concatenate([xt, h], axis=-1).reshape(B * N, DH).astype(f32)
    h2 = h.reshape(B * N, H).astype(f32)

    inputs = [att2, xh2, h2]
    in_specs = [bspec(N), bspec(DH), bspec(H)]

    if has_meta_adj:
        inputs.append(meta_adj.reshape(B * N, N).astype(cd))
        in_specs.append(bspec(N))

    if num_g > 0:
        if g_batched:
            gw = jnp.transpose(G[:, :num_g], (0, 2, 1, 3))      # (B, N, num_g, N)
            gw = gw.reshape(B * N, num_g * N).astype(cd)
            inputs.append(gw)
            in_specs.append(bspec(num_g * N))
        else:
            gw = jnp.transpose(G[:num_g], (1, 0, 2))            # (N, num_g, N)
            gw = gw.reshape(N, num_g * N).astype(cd)             # shared, no B copy
            inputs.append(gw)
            in_specs.append(pl.BlockSpec((N, num_g * N), lambda i: (0, 0)))

    # --- weights: per-order blocks, gate split into Wz/Wr, candidate split
    #     into x-part (h-rows zeroed, reuses the gate LHS) and (r*h)-part. ----
    Wg_r = Wg.reshape(K, DH, 2 * H)
    Wu_r = Wu.reshape(K, DH, H)
    Wz = Wg_r[:, :, :H]
    Wr = Wg_r[:, :, H:]
    xmask = (jnp.arange(DH) < D).astype(Wu_r.dtype)[None, :, None]
    Wu_x = Wu_r * xmask                                          # h-rows zeroed
    Wu_h = Wu_r[:, D:, :]                                        # (K, H, H)

    w_all = jnp.stack([Wz, Wr, Wu_x], axis=0).astype(cd)         # (3, K, DH, H)
    wuh = Wu_h.astype(cd)                                        # (K, H, H)
    b_all = jnp.stack([bg[:H], bg[H:], bu], axis=0).reshape(3, 1, H).astype(f32)

    inputs += [w_all, wuh, b_all]
    in_specs += [
        pl.BlockSpec((3, K, DH, H), lambda i: (0, 0, 0, 0)),
        pl.BlockSpec((K, H, H), lambda i: (0, 0, 0)),
        pl.BlockSpec((3, 1, H), lambda i: (0, 0, 0)),
    ]

    kernel = functools.partial(
        _gcru_cell_kernel, K=K, has_meta_adj=has_meta_adj, g_batched=g_batched,
        num_g=num_g, N=N, H=H, Bb=Bb, compute_dtype=cd)

    out2 = pl.pallas_call(
        kernel,
        out_shape=jax.ShapeDtypeStruct((B * N, H), xt.dtype),
        grid=grid,
        in_specs=in_specs,
        out_specs=pl.BlockSpec((rows_blk, H), lambda i: (i, 0)),
        compiler_params=pltpu.CompilerParams(dimension_semantics=("parallel",)),
    )(*inputs)
    return out2.reshape(B, N, H)


# ----------------------------------------------------------------------------
# Pure-JAX reference (line-by-line port of the PyTorch module)
# ----------------------------------------------------------------------------
def _gcn_ref(G, x, meta_att, meta_adj, W, b, cheb_k):
    supports = []
    K = cheb_k
    if meta_adj is not None:
        s = jnp.einsum('bij,bjp->bip', meta_adj, x)
        supports.append(jnp.einsum('bij,bjp->bip', meta_att, s))
        K -= 1
    for k in range(K):
        if G.ndim == 3:
            s = jnp.einsum('ij,bjp->bip', G[k], x)
        else:
            s = jnp.einsum('bij,bjp->bip', G[:, k], x)
        supports.append(jnp.einsum('bij,bjp->bip', meta_att, s))
    sc = jnp.concatenate(supports, axis=-1)
    return jnp.einsum('bip,pq->biq', sc, W) + b


def _cell_ref(G, xt, h, meta_att, meta_adj, Wg, bg, Wu, bu, cheb_k, H):
    combined = jnp.concatenate([xt, h], axis=-1)
    gate = jax.nn.sigmoid(_gcn_ref(G, combined, meta_att, meta_adj, Wg, bg, cheb_k))
    z, r = gate[..., :H], gate[..., H:]
    cand = jnp.concatenate([xt, r * h], axis=-1)
    hc = jnp.tanh(_gcn_ref(G, cand, meta_att, meta_adj, Wu, bu, cheb_k))
    return z * hc + (1.0 - z) * h


# ----------------------------------------------------------------------------
# Main
# ----------------------------------------------------------------------------
if __name__ == "__main__":
    B, N, D, H, K = 2, 16, 4, 32, 3       # batch, nodes, dim_in, gru_hidden, cheb_k
    DH = D + H

    key = jax.random.PRNGKey(0)
    keys = jax.random.split(key, 10)

    # Deterministic parameter init (xavier_normal_ for W, zeros for b).
    def xavier_normal(k, shape):
        std = (2.0 / (shape[0] + shape[1])) ** 0.5
        return std * jax.random.normal(k, shape, jnp.float32)

    Wg = xavier_normal(keys[0], (K * DH, 2 * H))
    bg = jnp.zeros((2 * H,), jnp.float32)
    Wu = xavier_normal(keys[1], (K * DH, H))
    bu = jnp.zeros((H,), jnp.float32)

    # Inputs.
    xt = jax.random.normal(keys[2], (B, N, D), jnp.float32)
    h0 = jax.random.normal(keys[3], (B, N, H), jnp.float32)
    G = jax.nn.softmax(jax.random.normal(keys[4], (K, N, N), jnp.float32), axis=-1)
    meta_att = jax.nn.softmax(jax.random.normal(keys[5], (B, N, N), jnp.float32), axis=-1)
    meta_adj = jax.nn.softmax(jax.random.normal(keys[6], (B, N, N), jnp.float32), axis=-1)

    # Case 1: meta_adj set (first support from meta_adj, cheb_k-1 from shared G).
    out1 = jax.block_until_ready(
        stmeta_gcru_cell(G, xt, h0, meta_att, meta_adj, Wg, bg, Wu, bu, K))
    ref1 = _cell_ref(G, xt, h0, meta_att, meta_adj, Wg, bg, Wu, bu, K, H)

    # Case 2: meta_adj is None (all cheb_k supports from shared G).
    out2 = jax.block_until_ready(
        stmeta_gcru_cell(G, xt, h0, meta_att, None, Wg, bg, Wu, bu, K))
    ref2 = _cell_ref(G, xt, h0, meta_att, None, Wg, bg, Wu, bu, K, H)

    # Case 3: batched (B, cheb_k, N, N) supports, meta_adj None.
    G4 = jnp.broadcast_to(G, (B, K, N, N))
    out3 = jax.block_until_ready(
        stmeta_gcru_cell(G4, xt, h0, meta_att, None, Wg, bg, Wu, bu, K))

    assert out1.shape == (B, N, H) and out2.shape == (B, N, H)
    assert jnp.allclose(out1, ref1, rtol=1e-4, atol=1e-4), "mismatch (meta_adj path)"
    assert jnp.allclose(out2, ref2, rtol=1e-4, atol=1e-4), "mismatch (plain path)"
    assert jnp.allclose(out3, ref2, rtol=1e-4, atol=1e-4), "mismatch (batched-G path)"

    # Case 4: larger batch -> batch-blocked grid (Bb=4, grid=(2,)), exercises the
    # stacked (Bb*N, D+H) weight matmuls and the per-b unrolled loop.
    B2 = 8
    xt2 = jax.random.normal(keys[7], (B2, N, D), jnp.float32)
    h02 = jax.random.normal(keys[8], (B2, N, H), jnp.float32)
    att2 = jax.nn.softmax(jax.random.normal(keys[9], (B2, N, N), jnp.float32), axis=-1)
    adj2 = jax.nn.softmax(jax.random.normal(keys[6], (B2, N, N), jnp.float32), axis=-1)
    out4 = jax.block_until_ready(
        stmeta_gcru_cell(G, xt2, h02, att2, adj2, Wg, bg, Wu, bu, K))
    ref4 = _cell_ref(G, xt2, h02, att2, adj2, Wg, bg, Wu, bu, K, H)
    assert jnp.allclose(out4, ref4, rtol=1e-4, atol=1e-4), "mismatch (batch-blocked path)"

    # Case 5: bf16 MXU inputs (fast path on v5e/v6e/v7x), f32 accumulation + epilogue.
    out_bf16 = jax.block_until_ready(
        stmeta_gcru_cell(G, xt, h0, meta_att, meta_adj, Wg, bg, Wu, bu, K,
                         compute_dtype=jnp.bfloat16))
    max_err = float(jnp.max(jnp.abs(out_bf16 - ref1)))
    assert max_err < 0.25, f"bf16 path error too large: {max_err}"

    print("KERNEL_OK")
</pallas_src>

<mosaic_0001>
module attributes {stable_mosaic.version = 11 : i64} {
  func.func @_gcru_cell_kernel(%arg0: i32, %arg1: memref<16x16xf32, #tpu.memory_space<vmem>>, %arg2: memref<16x36xf32, #tpu.memory_space<vmem>>, %arg3: memref<16x32xf32, #tpu.memory_space<vmem>>, %arg4: memref<16x16xf32, #tpu.memory_space<vmem>>, %arg5: memref<16x32xf32, #tpu.memory_space<vmem>>, %arg6: memref<3x3x36x32xf32, #tpu.memory_space<vmem>>, %arg7: memref<3x32x32xf32, #tpu.memory_space<vmem>>, %arg8: memref<3x1x32xf32, #tpu.memory_space<vmem>>, %arg9: memref<16x32xf32, #tpu.memory_space<vmem>>) attributes {dimension_semantics = [#tpu.dimension_semantics<parallel>], iteration_bounds = array<i64: 2>, scalar_prefetch = 0 : i64, scratch_operands = 0 : i64, tpu.core_type = #tpu.core_type<tc>, window_params = [{transform_indices = @transform_0, window_bounds = array<i64: 16, 16>}, {transform_indices = @transform_1, window_bounds = array<i64: 16, 36>}, {transform_indices = @transform_2, window_bounds = array<i64: 16, 32>}, {transform_indices = @transform_3, window_bounds = array<i64: 16, 16>}, {pipeline_mode = #tpu.pipeline_mode<synchronous>, transform_indices = @transform_4, window_bounds = array<i64: 16, 32>}, {pipeline_mode = #tpu.pipeline_mode<synchronous>, transform_indices = @transform_5, window_bounds = array<i64: 3, 3, 36, 32>}, {pipeline_mode = #tpu.pipeline_mode<synchronous>, transform_indices = @transform_6, window_bounds = array<i64: 3, 32, 32>}, {pipeline_mode = #tpu.pipeline_mode<synchronous>, transform_indices = @transform_7, window_bounds = array<i64: 3, 1, 32>}, {transform_indices = @transform_8, window_bounds = array<i64: 16, 32>}]} {
    %c0 = arith.constant 0 : index
    %c0_0 = arith.constant 0 : index
    %0 = vector.load %arg1[%c0, %c0_0] : memref<16x16xf32, #tpu.memory_space<vmem>>, vector<16x16xf32>
    %c0_1 = arith.constant 0 : index
    %c0_2 = arith.constant 0 : index
    %1 = vector.load %arg2[%c0_1, %c0_2] : memref<16x36xf32, #tpu.memory_space<vmem>>, vector<16x36xf32>
    %c0_3 = arith.constant 0 : index
    %c0_4 = arith.constant 0 : index
    %2 = vector.load %arg3[%c0_3, %c0_4] : memref<16x32xf32, #tpu.memory_space<vmem>>, vector<16x32xf32>
    %c0_5 = arith.constant 0 : index
    %c0_6 = arith.constant 0 : index
    %c0_7 = arith.constant 0 : index
    %c0_8 = arith.constant 0 : index
    %3 = vector.load %arg6[%c0_5, %c0_6, %c0_7, %c0_8] : memref<3x3x36x32xf32, #tpu.memory_space<vmem>>, vector<3x3x36x32xf32>
    %c0_9 = arith.constant 0 : index
    %c0_10 = arith.constant 0 : index
    %c0_11 = arith.constant 0 : index
    %4 = vector.load %arg7[%c0_9, %c0_10, %c0_11] : memref<3x32x32xf32, #tpu.memory_space<vmem>>, vector<3x32x32xf32>
    %c0_12 = arith.constant 0 : index
    %c0_13 = arith.constant 0 : index
    %c0_14 = arith.constant 0 : index
    %5 = vector.load %arg8[%c0_12, %c0_13, %c0_14] : memref<3x1x32xf32, #tpu.memory_space<vmem>>, vector<3x1x32xf32>
    %c0_15 = arith.constant 0 : index
    %c0_16 = arith.constant 0 : index
    %6 = vector.load %arg5[%c0_15, %c0_16] : memref<16x32xf32, #tpu.memory_space<vmem>>, vector<16x32xf32>
    %cst = arith.constant dense<0.000000e+00> : vector<16x32xf32>
    %7 = tpu.matmul %0, %6, %cst {dimension_numbers = #tpu.dot_dimension_numbers<[1], [0], [0], [1], [0, 0, 1, 1], [], []>} : vector<16x16xf32>, vector<16x32xf32>, vector<16x32xf32> -> vector<16x32xf32>
    %c0_17 = arith.constant 0 : index
    %c0_18 = arith.constant 0 : index
    %8 = vector.load %arg4[%c0_17, %c0_18] : memref<16x16xf32, #tpu.memory_space<vmem>>, vector<16x16xf32>
    %cst_19 = arith.constant dense<0.000000e+00> : vector<16x16xf32>
    %9 = tpu.matmul %0, %8, %cst_19 {dimension_numbers = #tpu.dot_dimension_numbers<[1], [0], [0], [1], [0, 0, 1, 1], [], []>} : vector<16x16xf32>, vector<16x16xf32>, vector<16x16xf32> -> vector<16x16xf32>
    %10 = vector.extract_strided_slice %7 {offsets = [0, 0], sizes = [16, 16], strides = [1, 1]} : vector<16x32xf32> to vector<16x16xf32>
    %11 = vector.extract_strided_slice %7 {offsets = [0, 16], sizes = [16, 16], strides = [1, 1]} : vector<16x32xf32> to vector<16x16xf32>
    %cst_20 = arith.constant 0.000000e+00 : f32
    %12 = vector.broadcast %cst_20 : f32 to vector<16x32xf32>
    %cst_21 = arith.constant dense<0.000000e+00> : vector<16x36xf32>
    %13 = tpu.matmul %9, %1, %cst_21 {dimension_numbers = #tpu.dot_dimension_numbers<[1], [0], [0], [1], [0, 0, 1, 1], [], []>} : vector<16x16xf32>, vector<16x36xf32>, vector<16x36xf32> -> vector<16x36xf32>
    %14 = vector.extract_strided_slice %3 {offsets = [0, 0, 0, 0], sizes = [1, 1, 36, 32], strides = [1, 1, 1, 1]} : vector<3x3x36x32xf32> to vector<1x1x36x32xf32>
    %15 = vector.shape_cast %14 : vector<1x1x36x32xf32> to vector<36x32xf32>
    %cst_22 = arith.constant dense<0.000000e+00> : vector<16x32xf32>
    %16 = tpu.matmul %13, %15, %cst_22 {dimension_numbers = #tpu.dot_dimension_numbers<[1], [0], [0], [1], [0, 0, 1, 1], [], []>} : vector<16x36xf32>, vector<36x32xf32>, vector<16x32xf32> -> vector<16x32xf32>
    %17 = arith.addf %12, %16 : vector<16x32xf32>
    %18 = vector.extract_strided_slice %3 {offsets = [1, 0, 0, 0], sizes = [1, 1, 36, 32], strides = [1, 1, 1, 1]} : vector<3x3x36x32xf32> to vector<1x1x36x32xf32>
    %19 = vector.shape_cast %18 : vector<1x1x36x32xf32> to vector<36x32xf32>
    %cst_23 = arith.constant dense<0.000000e+00> : vector<16x32xf32>
    %20 = tpu.matmul %13, %19, %cst_23 {dimension_numbers = #tpu.dot_dimension_numbers<[1], [0], [0], [1], [0, 0, 1, 1], [], []>} : vector<16x36xf32>, vector<36x32xf32>, vector<16x32xf32> -> vector<16x32xf32>
    %21 = arith.addf %12, %20 : vector<16x32xf32>
    %22 = vector.extract_strided_slice %3 {offsets = [2, 0, 0, 0], sizes = [1, 1, 36, 32], strides = [1, 1, 1, 1]} : vector<3x3x36x32xf32> to vector<1x1x36x32xf32>
    %23 = vector.shape_cast %22 : vector<1x1x36x32xf32> to vector<36x32xf32>
    %cst_24 = arith.constant dense<0.000000e+00> : vector<16x32xf32>
    %24 = tpu.matmul %13, %23, %cst_24 {dimension_numbers = #tpu.dot_dimension_numbers<[1], [0], [0], [1], [0, 0, 1, 1], [], []>} : vector<16x36xf32>, vector<36x32xf32>, vector<16x32xf32> -> vector<16x32xf32>
    %25 = arith.addf %12, %24 : vector<16x32xf32>
    %cst_25 = arith.constant dense<0.000000e+00> : vector<16x36xf32>
    %26 = tpu.matmul %10, %1, %cst_25 {dimension_numbers = #tpu.dot_dimension_numbers<[1], [0], [0], [1], [0, 0, 1, 1], [], []>} : vector<16x16xf32>, vector<16x36xf32>, vector<16x36xf32> -> vector<16x36xf32>
    %27 = vector.extract_strided_slice %3 {offsets = [0, 1, 0, 0], sizes = [1, 1, 36, 32], strides = [1, 1, 1, 1]} : vector<3x3x36x32xf32> to vector<1x1x36x32xf32>
    %28 = vector.shape_cast %27 : vector<1x1x36x32xf32> to vector<36x32xf32>
    %cst_26 = arith.constant dense<0.000000e+00> : vector<16x32xf32>
    %29 = tpu.matmul %26, %28, %cst_26 {dimension_numbers = #tpu.dot_dimension_numbers<[1], [0], [0], [1], [0, 0, 1, 1], [], []>} : vector<16x36xf32>, vector<36x32xf32>, vector<16x32xf32> -> vector<16x32xf32>
    %30 = arith.addf %17, %29 : vector<16x32xf32>
    %31 = vector.extract_strided_slice %3 {offsets = [1, 1, 0, 0], sizes = [1, 1, 36, 32], strides = [1, 1, 1, 1]} : vector<3x3x36x32xf32> to vector<1x1x36x32xf32>
    %32 = vector.shape_cast %31 : vector<1x1x36x32xf32> to vector<36x32xf32>
    %cst_27 = arith.constant dense<0.000000e+00> : vector<16x32xf32>
    %33 = tpu.matmul %26, %32, %cst_27 {dimension_numbers = #tpu.dot_dimension_numbers<[1], [0], [0], [1], [0, 0, 1, 1], [], []>} : vector<16x36xf32>, vector<36x32xf32>, vector<16x32xf32> -> vector<16x32xf32>
    %34 = arith.addf %21, %33 : vector<16x32xf32>
    %35 = vector.extract_strided_slice %3 {offsets = [2, 1, 0, 0], sizes = [1, 1, 36, 32], strides = [1, 1, 1, 1]} : vector<3x3x36x32xf32> to vector<1x1x36x32xf32>
    %36 = vector.shape_cast %35 : vector<1x1x36x32xf32> to vector<36x32xf32>
    %cst_28 = arith.constant dense<0.000000e+00> : vector<16x32xf32>
    %37 = tpu.matmul %26, %36, %cst_28 {dimension_numbers = #tpu.dot_dimension_numbers<[1], [0], [0], [1], [0, 0, 1, 1], [], []>} : vector<16x36xf32>, vector<36x32xf32>, vector<16x32xf32> -> vector<16x32xf32>
    %38 = arith.addf %25, %37 : vector<16x32xf32>
    %cst_29 = arith.constant dense<0.000000e+00> : vector<16x36xf32>
    %39 = tpu.matmul %11, %1, %cst_29 {dimension_numbers = #tpu.dot_dimension_numbers<[1], [0], [0], [1], [0, 0, 1, 1], [], []>} : vector<16x16xf32>, vector<16x36xf32>, vector<16x36xf32> -> vector<16x36xf32>
    %40 = vector.extract_strided_slice %3 {offsets = [0, 2, 0, 0], sizes = [1, 1, 36, 32], strides = [1, 1, 1, 1]} : vector<3x3x36x32xf32> to vector<1x1x36x32xf32>
    %41 = vector.shape_cast %40 : vector<1x1x36x32xf32> to vector<36x32xf32>
    %cst_30 = arith.constant dense<0.000000e+00> : vector<16x32xf32>
    %42 = tpu.matmul %39, %41, %cst_30 {dimension_numbers = #tpu.dot_dimension_numbers<[1], [0], [0], [1], [0, 0, 1, 1], [], []>} : vector<16x36xf32>, vector<36x32xf32>, vector<16x32xf32> -> vector<16x32xf32>
    %43 = arith.addf %30, %42 : vector<16x32xf32>
    %44 = vector.extract_strided_slice %3 {offsets = [1, 2, 0, 0], sizes = [1, 1, 36, 32], strides = [1, 1, 1, 1]} : vector<3x3x36x32xf32> to vector<1x1x36x32xf32>
    %45 = vector.shape_cast %44 : vector<1x1x36x32xf32> to vector<36x32xf32>
    %cst_31 = arith.constant dense<0.000000e+00> : vector<16x32xf32>
    %46 = tpu.matmul %39, %45, %cst_31 {dimension_numbers = #tpu.dot_dimension_numbers<[1], [0], [0], [1], [0, 0, 1, 1], [], []>} : vector<16x36xf32>, vector<36x32xf32>, vector<16x32xf32> -> vector<16x32xf32>
    %47 = arith.addf %34, %46 : vector<16x32xf32>
    %48 = vector.extract_strided_slice %3 {offsets = [2, 2, 0, 0], sizes = [1, 1, 36, 32], strides = [1, 1, 1, 1]} : vector<3x3x36x32xf32> to vector<1x1x36x32xf32>
    %49 = vector.shape_cast %48 : vector<1x1x36x32xf32> to vector<36x32xf32>
    %cst_32 = arith.constant dense<0.000000e+00> : vector<16x32xf32>
    %50 = tpu.matmul %39, %49, %cst_32 {dimension_numbers = #tpu.dot_dimension_numbers<[1], [0], [0], [1], [0, 0, 1, 1], [], []>} : vector<16x36xf32>, vector<36x32xf32>, vector<16x32xf32> -> vector<16x32xf32>
    %51 = arith.addf %38, %50 : vector<16x32xf32>
    %52 = vector.extract_strided_slice %5 {offsets = [0, 0, 0], sizes = [1, 1, 32], strides = [1, 1, 1]} : vector<3x1x32xf32> to vector<1x1x32xf32>
    %53 = vector.shape_cast %52 : vector<1x1x32xf32> to vector<1x32xf32>
    %54 = vector.broadcast %53 : vector<1x32xf32> to vector<16x32xf32>
    %55 = arith.addf %43, %54 : vector<16x32xf32>
    %56 = arith.negf %55 : vector<16x32xf32>
    %57 = math.exp %56 : vector<16x32xf32>
    %cst_33 = arith.constant 1.000000e+00 : f32
    %58 = vector.broadcast %cst_33 : f32 to vector<16x32xf32>
    %59 = arith.addf %58, %57 : vector<16x32xf32>
    %60 = arith.divf %58, %59 : vector<16x32xf32>
    %61 = vector.extract_strided_slice %5 {offsets = [1, 0, 0], sizes = [1, 1, 32], strides = [1, 1, 1]} : vector<3x1x32xf32> to vector<1x1x32xf32>
    %62 = vector.shape_cast %61 : vector<1x1x32xf32> to vector<1x32xf32>
    %63 = vector.broadcast %62 : vector<1x32xf32> to vector<16x32xf32>
    %64 = arith.addf %47, %63 : vector<16x32xf32>
    %65 = arith.negf %64 : vector<16x32xf32>
    %66 = math.exp %65 : vector<16x32xf32>
    %cst_34 = arith.constant 1.000000e+00 : f32
    %67 = vector.broadcast %cst_34 : f32 to vector<16x32xf32>
    %68 = arith.addf %67, %66 : vector<16x32xf32>
    %69 = arith.divf %67, %68 : vector<16x32xf32>
    %70 = arith.mulf %69, %2 : vector<16x32xf32>
    %cst_35 = arith.constant dense<0.000000e+00> : vector<16x32xf32>
    %71 = tpu.matmul %9, %70, %cst_35 {dimension_numbers = #tpu.dot_dimension_numbers<[1], [0], [0], [1], [0, 0, 1, 1], [], []>} : vector<16x16xf32>, vector<16x32xf32>, vector<16x32xf32> -> vector<16x32xf32>
    %72 = vector.extract_strided_slice %4 {offsets = [0, 0, 0], sizes = [1, 32, 32], strides = [1, 1, 1]} : vector<3x32x32xf32> to vector<1x32x32xf32>
    %73 = vector.shape_cast %72 : vector<1x32x32xf32> to vector<32x32xf32>
    %cst_36 = arith.constant dense<0.000000e+00> : vector<16x32xf32>
    %74 = tpu.matmul %71, %73, %cst_36 {dimension_numbers = #tpu.dot_dimension_numbers<[1], [0], [0], [1], [0, 0, 1, 1], [], []>} : vector<16x32xf32>, vector<32x32xf32>, vector<16x32xf32> -> vector<16x32xf32>
    %75 = arith.addf %51, %74 : vector<16x32xf32>
    %cst_37 = arith.constant dense<0.000000e+00> : vector<16x32xf32>
    %76 = tpu.matmul %10, %70, %cst_37 {dimension_numbers = #tpu.dot_dimension_numbers<[1], [0], [0], [1], [0, 0, 1, 1], [], []>} : vector<16x16xf32>, vector<16x32xf32>, vector<16x32xf32> -> vector<16x32xf32>
    %77 = vector.extract_strided_slice %4 {offsets = [1, 0, 0], sizes = [1, 32, 32], strides = [1, 1, 1]} : vector<3x32x32xf32> to vector<1x32x32xf32>
    %78 = vector.shape_cast %77 : vector<1x32x32xf32> to vector<32x32xf32>
    %cst_38 = arith.constant dense<0.000000e+00> : vector<16x32xf32>
    %79 = tpu.matmul %76, %78, %cst_38 {dimension_numbers = #tpu.dot_dimension_numbers<[1], [0], [0], [1], [0, 0, 1, 1], [], []>} : vector<16x32xf32>, vector<32x32xf32>, vector<16x32xf32> -> vector<16x32xf32>
    %80 = arith.addf %75, %79 : vector<16x32xf32>
    %cst_39 = arith.constant dense<0.000000e+00> : vector<16x32xf32>
    %81 = tpu.matmul %11, %70, %cst_39 {dimension_numbers = #tpu.dot_dimension_numbers<[1], [0], [0], [1], [0, 0, 1, 1], [], []>} : vector<16x16xf32>, vector<16x32xf32>, vector<16x32xf32> -> vector<16x32xf32>
    %82 = vector.extract_strided_slice %4 {offsets = [2, 0, 0], sizes = [1, 32, 32], strides = [1, 1, 1]} : vector<3x32x32xf32> to vector<1x32x32xf32>
    %83 = vector.shape_cast %82 : vector<1x32x32xf32> to vector<32x32xf32>
    %cst_40 = arith.constant dense<0.000000e+00> : vector<16x32xf32>
    %84 = tpu.matmul %81, %83, %cst_40 {dimension_numbers = #tpu.dot_dimension_numbers<[1], [0], [0], [1], [0, 0, 1, 1], [], []>} : vector<16x32xf32>, vector<32x32xf32>, vector<16x32xf32> -> vector<16x32xf32>
    %85 = arith.addf %80, %84 : vector<16x32xf32>
    %86 = vector.extract_strided_slice %5 {offsets = [2, 0, 0], sizes = [1, 1, 32], strides = [1, 1, 1]} : vector<3x1x32xf32> to vector<1x1x32xf32>
    %87 = vector.shape_cast %86 : vector<1x1x32xf32> to vector<1x32xf32>
    %88 = vector.broadcast %87 : vector<1x32xf32> to vector<16x32xf32>
    %89 = arith.addf %85, %88 : vector<16x32xf32>
    %90 = math.tanh %89 : vector<16x32xf32>
    %91 = arith.mulf %60, %90 : vector<16x32xf32>
    %cst_41 = arith.constant 1.000000e+00 : f32
    %92 = vector.broadcast %cst_41 : f32 to vector<16x32xf32>
    %93 = arith.subf %92, %60 : vector<16x32xf32>
    %94 = arith.mulf %93, %2 : vector<16x32xf32>
    %95 = arith.addf %91, %94 : vector<16x32xf32>
    %c0_42 = arith.constant 0 : index
    %c0_43 = arith.constant 0 : index
    %96 = vector.load %arg9[%c0_42, %c0_43] : memref<16x32xf32, #tpu.memory_space<vmem>>, vector<16x32xf32>
    tpu.vector_store %arg9[%c0_42, %c0_43], %95 {strides = array<i32>} : memref<16x32xf32, #tpu.memory_space<vmem>>, vector<16x32xf32>,
    return
  }
  func.func @transform_0(%arg0: i32) -> (i32, i32) {
    %c0_i32 = arith.constant 0 : i32
    %c0_i32_0 = arith.constant 0 : i32
    return %arg0, %c0_i32 : i32, i32
  }
  func.func @transform_1(%arg0: i32) -> (i32, i32) {
    %c0_i32 = arith.constant 0 : i32
    %c0_i32_0 = arith.constant 0 : i32
    return %arg0, %c0_i32 : i32, i32
  }
  func.func @transform_2(%arg0: i32) -> (i32, i32) {
    %c0_i32 = arith.constant 0 : i32
    %c0_i32_0 = arith.constant 0 : i32
    return %arg0, %c0_i32 : i32, i32
  }
  func.func @transform_3(%arg0: i32) -> (i32, i32) {
    %c0_i32 = arith.constant 0 : i32
    %c0_i32_0 = arith.constant 0 : i32
    return %arg0, %c0_i32 : i32, i32
  }
  func.func @transform_4(%arg0: i32) -> (i32, i32) {
    %c0_i32 = arith.constant 0 : i32
    %c0_i32_0 = arith.constant 0 : i32
    %c0_i32_1 = arith.constant 0 : i32
    return %c0_i32, %c0_i32_0 : i32, i32
  }
  func.func @transform_5(%arg0: i32) -> (i32, i32, i32, i32) {
    %c0_i32 = arith.constant 0 : i32
    %c0_i32_0 = arith.constant 0 : i32
    %c0_i32_1 = arith.constant 0 : i32
    %c0_i32_2 = arith.constant 0 : i32
    %c0_i32_3 = arith.constant 0 : i32
    return %c0_i32, %c0_i32_0, %c0_i32_1, %c0_i32_2 : i32, i32, i32, i32
  }
  func.func @transform_6(%arg0: i32) -> (i32, i32, i32) {
    %c0_i32 = arith.constant 0 : i32
    %c0_i32_0 = arith.constant 0 : i32
    %c0_i32_1 = arith.constant 0 : i32
    %c0_i32_2 = arith.constant 0 : i32
    return %c0_i32, %c0_i32_0, %c0_i32_1 : i32, i32, i32
  }
  func.func @transform_7(%arg0: i32) -> (i32, i32, i32) {
    %c0_i32 = arith.constant 0 : i32
    %c0_i32_0 = arith.constant 0 : i32
    %c0_i32_1 = arith.constant 0 : i32
    %c0_i32_2 = arith.constant 0 : i32
    return %c0_i32, %c0_i32_0, %c0_i32_1 : i32, i32, i32
  }
  func.func @transform_8(%arg0: i32) -> (i32, i32) {
    %c0_i32 = arith.constant 0 : i32
    %c0_i32_0 = arith.constant 0 : i32
    return %arg0, %c0_i32 : i32, i32
  }
}

</mosaic_0001>

<llo_original>
// kernel: tpu_custom_call.1
$region0: #{tpu_custom_call.1}
  #allocation0 [shape = 'u32[]', space=smem, size = 0x4, offset = 0x4, fixed_abs, tag = 'smem constant byte address 0x4 - core index']
  #allocation1 [shape = 'u32[144,128]{1,0:T(1,128)}', space=vmem, size = 0x12000, scoped, tag = 'internal scratch']
  %s0 = inlined_call_operand.vmem [shape: f32[32,16], index: 0, kind: input, shape index: {}]
  %s1 = inlined_call_operand.vmem [shape: f32[32,36], index: 1, kind: input, shape index: {}]
  %s2 = inlined_call_operand.vmem [shape: f32[32,32], index: 2, kind: input, shape index: {}]
  %s3 = inlined_call_operand.vmem [shape: f32[32,16], index: 3, kind: input, shape index: {}]
  %s4 = inlined_call_operand.vmem [shape: f32[16,32], index: 4, kind: input, shape index: {}]
  %s5 = inlined_call_operand.vmem [shape: f32[3,3,36,32], index: 5, kind: input, shape index: {}]
  %s6 = inlined_call_operand.vmem [shape: f32[3,32,32], index: 6, kind: input, shape index: {}]
  %s7 = inlined_call_operand.vmem [shape: f32[3,1,32], index: 7, kind: input, shape index: {}]
  %s8 = inlined_call_operand.hbm [shape: f32[32,32], index: 8, kind: output, shape index: {}]
  %s9 = sld [smem:[#allocation0]]
  $region65: #{tpu_custom_call.1} parent=0
    _
  %s11 = ssub.s32 1, %s9
  %s12 = scalar_select 0, %s11, %s9
  $region1: #{tpu_custom_call.1} parent=0
    #allocation2 [shape = 'u8[16384]{0}', space=vmem, size = 0x4000, scoped, tag = 'output window, operand 0']
    #allocation3 [shape = 's32[2]{0}', space=sflag, size = 0x8, scoped, tag = 'scoped memory for tpu_custom_call.1']
    %13 = vsyncpa [#allocation3], 0
    %s14 = scalar_lea.sflag [#allocation3], 1
    %15 = vsyncpa %s14, 0
    loop: start=0, step=1, limit=4
    $region2: #{tpu_custom_call.1} parent=1 // loop_pre_header
      _
    $region3: #{tpu_custom_call.1} parent=1 // loop_header
      %s17 = sphi 0, %s21
      %p18 = scmp.ge.s32.totalorder %s17, 4
      %s27 = sphi 0, %s29
      %s30 = sphi 0, %s27
      %s31 = sphi 0, %s30
      %s47 = sphi 0, %s31
      %s53 = sphi 0, %s55
      %s56 = sphi 0, %s53
      %s57 = sphi 0, %s56
      %s73 = sphi 0, %s57
      %s79 = sphi 0, %s81
      %s82 = sphi 0, %s79
      %s83 = sphi 0, %s82
      %s99 = sphi 0, %s83
      %s105 = sphi 0, %s107
      %s108 = sphi 0, %s105
      %s109 = sphi 0, %s108
      %s125 = sphi 0, %s109
      %s129 = sphi 0, %s129
      %s131 = sphi 0, %s129
      %s132 = sphi 0, %s131
      %s146 = sphi 0, %s132
      %s150 = sphi 0, %s150
      %s152 = sphi 0, %s150
      %s153 = sphi 0, %s152
      %s167 = sphi 0, %s153
      %s171 = sphi 0, %s171
      %s173 = sphi 0, %s171
      %s174 = sphi 0, %s173
      %s188 = sphi 0, %s174
      %s192 = sphi 0, %s192
      %s194 = sphi 0, %s192
      %s195 = sphi 0, %s194
      %s209 = sphi 0, %s195
      %s215 = sphi 0, %s217
      %s218 = sphi 0, %s215
      %s219 = sphi 0, %s218
      %s235 = sphi 0, %s219
    $region4: #{tpu_custom_call.1} parent=1 // loop_header_branch
      %20 = sbr.rel (%p18) target = $region8
    $region5: #{tpu_custom_call.1} parent=1 // loop_body
      %s22 = ssub.s32 %s17, 1
      %s23 = ssub.s32 %s17, 2
      %s24 = sadd.s32 %s17, 1
      %s25 = ssub.s32 %s17, %s24
      %p26 = scmp.eq.s32.totalorder %s25, 0
      %s28 = sadd.s32 %s27, 1
      %s29 = scalar_select %p26, %s27, %s28
      %p32 = pneg %p26
      %p33 = scmp.eq.s32.totalorder %s17, 1
      %p34 = por %p32, %p33
      %p35 = scmp.ne.s32.totalorder %s27, %s30
      %p36 = scmp.eq.s32.totalorder %s17, 0
      %p37 = por %p35, %p36
      %p38 = scmp.ne.s32.totalorder %s27, %s30
      %p39 = scmp.eq.s32.totalorder %s22, 1
      %p40 = por %p38, %p39
      %p41 = scmp.ne.s32.totalorder %s30, %s31
      %p42 = scmp.eq.s32.totalorder %s22, 0
      %p43 = por %p41, %p42
      %p44 = scmp.ne.s32.totalorder %s30, %s31
      %p45 = scmp.eq.s32.totalorder %s23, 1
      %p46 = por %p44, %p45
      %p48 = scmp.ne.s32.totalorder %s31, %s47
      %p49 = scmp.eq.s32.totalorder %s23, 0
      %p50 = por %p48, %p49
      %s51 = ssub.s32 %s17, %s24
      %p52 = scmp.eq.s32.totalorder %s51, 0
      %s54 = sadd.s32 %s53, 1
      %s55 = scalar_select %p52, %s53, %s54
      %p58 = pneg %p52
      %p59 = scmp.eq.s32.totalorder %s17, 1
      %p60 = por %p58, %p59
      %p61 = scmp.ne.s32.totalorder %s53, %s56
      %p62 = scmp.eq.s32.totalorder %s17, 0
      %p63 = por %p61, %p62
      %p64 = scmp.ne.s32.totalorder %s53, %s56
      %p65 = scmp.eq.s32.totalorder %s22, 1
      %p66 = por %p64, %p65
      %p67 = scmp.ne.s32.totalorder %s56, %s57
      %p68 = scmp.eq.s32.totalorder %s22, 0
      %p69 = por %p67, %p68
      %p70 = scmp.ne.s32.totalorder %s56, %s57
      %p71 = scmp.eq.s32.totalorder %s23, 1
      %p72 = por %p70, %p71
      %p74 = scmp.ne.s32.totalorder %s57, %s73
      %p75 = scmp.eq.s32.totalorder %s23, 0
      %p76 = por %p74, %p75
      %s77 = ssub.s32 %s17, %s24
      %p78 = scmp.eq.s32.totalorder %s77, 0
      %s80 = sadd.s32 %s79, 1
      %s81 = scalar_select %p78, %s79, %s80
      %p84 = pneg %p78
      %p85 = scmp.eq.s32.totalorder %s17, 1
      %p86 = por %p84, %p85
      %p87 = scmp.ne.s32.totalorder %s79, %s82
      %p88 = scmp.eq.s32.totalorder %s17, 0
      %p89 = por %p87, %p88
      %p90 = scmp.ne.s32.totalorder %s79, %s82
      %p91 = scmp.eq.s32.totalorder %s22, 1
      %p92 = por %p90, %p91
      %p93 = scmp.ne.s32.totalorder %s82, %s83
      %p94 = scmp.eq.s32.totalorder %s22, 0
      %p95 = por %p93, %p94
      %p96 = scmp.ne.s32.totalorder %s82, %s83
      %p97 = scmp.eq.s32.totalorder %s23, 1
      %p98 = por %p96, %p97
      %p100 = scmp.ne.s32.totalorder %s83, %s99
      %p101 = scmp.eq.s32.totalorder %s23, 0
      %p102 = por %p100, %p101
      %s103 = ssub.s32 %s17, %s24
      %p104 = scmp.eq.s32.totalorder %s103, 0
      %s106 = sadd.s32 %s105, 1
      %s107 = scalar_select %p104, %s105, %s106
      %p110 = pneg %p104
      %p111 = scmp.eq.s32.totalorder %s17, 1
      %p112 = por %p110, %p111
      %p113 = scmp.ne.s32.totalorder %s105, %s108
      %p114 = scmp.eq.s32.totalorder %s17, 0
      %p115 = por %p113, %p114
      %p116 = scmp.ne.s32.totalorder %s105, %s108
      %p117 = scmp.eq.s32.totalorder %s22, 1
      %p118 = por %p116, %p117
      %p119 = scmp.ne.s32.totalorder %s108, %s109
      %p120 = scmp.eq.s32.totalorder %s22, 0
      %p121 = por %p119, %p120
      %p122 = scmp.ne.s32.totalorder %s108, %s109
      %p123 = scmp.eq.s32.totalorder %s23, 1
      %p124 = por %p122, %p123
      %p126 = scmp.ne.s32.totalorder %s109, %s125
      %p127 = scmp.eq.s32.totalorder %s23, 0
      %p128 = por %p126, %p127
      %s130 = sadd.s32 %s129, 1
      %p133 = scmp.eq.s32.totalorder %s17, 1
      %p134 = scmp.ne.s32.totalorder %s129, %s131
      %p135 = scmp.eq.s32.totalorder %s17, 0
      %p136 = por %p134, %p135
      %p137 = scmp.ne.s32.totalorder %s129, %s131
      %p138 = scmp.eq.s32.totalorder %s22, 1
      %p139 = por %p137, %p138
      %p140 = scmp.ne.s32.totalorder %s131, %s132
      %p141 = scmp.eq.s32.totalorder %s22, 0
      %p142 = por %p140, %p141
      %p143 = scmp.ne.s32.totalorder %s131, %s132
      %p144 = scmp.eq.s32.totalorder %s23, 1
      %p145 = por %p143, %p144
      %p147 = scmp.ne.s32.totalorder %s132, %s146
      %p148 = scmp.eq.s32.totalorder %s23, 0
      %p149 = por %p147, %p148
      %s151 = sadd.s32 %s150, 1
      %p154 = scmp.eq.s32.totalorder %s17, 1
      %p155 = scmp.ne.s32.totalorder %s150, %s152
      %p156 = scmp.eq.s32.totalorder %s17, 0
      %p157 = por %p155, %p156
      %p158 = scmp.ne.s32.totalorder %s150, %s152
      %p159 = scmp.eq.s32.totalorder %s22, 1
      %p160 = por %p158, %p159
      %p161 = scmp.ne.s32.totalorder %s152, %s153
      %p162 = scmp.eq.s32.totalorder %s22, 0
      %p163 = por %p161, %p162
      %p164 = scmp.ne.s32.totalorder %s152, %s153
      %p165 = scmp.eq.s32.totalorder %s23, 1
      %p166 = por %p164, %p165
      %p168 = scmp.ne.s32.totalorder %s153, %s167
      %p169 = scmp.eq.s32.totalorder %s23, 0
      %p170 = por %p168, %p169
      %s172 = sadd.s32 %s171, 1
      %p175 = scmp.eq.s32.totalorder %s17, 1
      %p176 = scmp.ne.s32.totalorder %s171, %s173
      %p177 = scmp.eq.s32.totalorder %s17, 0
      %p178 = por %p176, %p177
      %p179 = scmp.ne.s32.totalorder %s171, %s173
      %p180 = scmp.eq.s32.totalorder %s22, 1
      %p181 = por %p179, %p180
      %p182 = scmp.ne.s32.totalorder %s173, %s174
      %p183 = scmp.eq.s32.totalorder %s22, 0
      %p184 = por %p182, %p183
      %p185 = scmp.ne.s32.totalorder %s173, %s174
      %p186 = scmp.eq.s32.totalorder %s23, 1
      %p187 = por %p185, %p186
      %p189 = scmp.ne.s32.totalorder %s174, %s188
      %p190 = scmp.eq.s32.totalorder %s23, 0
      %p191 = por %p189, %p190
      %s193 = sadd.s32 %s192, 1
      %p196 = scmp.eq.s32.totalorder %s17, 1
      %p197 = scmp.ne.s32.totalorder %s192, %s194
      %p198 = scmp.eq.s32.totalorder %s17, 0
      %p199 = por %p197, %p198
      %p200 = scmp.ne.s32.totalorder %s192, %s194
      %p201 = scmp.eq.s32.totalorder %s22, 1
      %p202 = por %p200, %p201
      %p203 = scmp.ne.s32.totalorder %s194, %s195
      %p204 = scmp.eq.s32.totalorder %s22, 0
      %p205 = por %p203, %p204
      %p206 = scmp.ne.s32.totalorder %s194, %s195
      %p207 = scmp.eq.s32.totalorder %s23, 1
      %p208 = por %p206, %p207
      %p210 = scmp.ne.s32.totalorder %s195, %s209
      %p211 = scmp.eq.s32.totalorder %s23, 0
      %p212 = por %p210, %p211
      %s213 = ssub.s32 %s17, %s24
      %p214 = scmp.eq.s32.totalorder %s213, 0
      %s216 = sadd.s32 %s215, 1
      %s217 = scalar_select %p214, %s215, %s216
      %p220 = pneg %p214
      %p221 = scmp.eq.s32.totalorder %s17, 1
      %p222 = por %p220, %p221
      %p223 = scmp.ne.s32.totalorder %s215, %s218
      %p224 = scmp.eq.s32.totalorder %s17, 0
      %p225 = por %p223, %p224
      %p226 = scmp.ne.s32.totalorder %s215, %s218
      %p227 = scmp.eq.s32.totalorder %s22, 1
      %p228 = por %p226, %p227
      %p229 = scmp.ne.s32.totalorder %s218, %s219
      %p230 = scmp.eq.s32.totalorder %s22, 0
      %p231 = por %p229, %p230
      %p232 = scmp.ne.s32.totalorder %s218, %s219
      %p233 = scmp.eq.s32.totalorder %s23, 1
      %p234 = por %p232, %p233
      %p236 = scmp.ne.s32.totalorder %s219, %s235
      %p237 = scmp.eq.s32.totalorder %s23, 0
      %p238 = por %p236, %p237
      %p239 = scmp.le.s32.totalorder 1, %s17
      %p240 = scmp.lt.s32.totalorder %s17, 3
      %p241 = pnand %p239, %p240
      %p242 = pneg %p241
      // Predicated region
      $region9: #{tpu_custom_call.1} parent=5 // pred_check
        _
      $region10: #{tpu_custom_call.1} parent=5 // pred_check_branch
        %244 = sbr.rel (%p241) target = $region12
      $region11: #{tpu_custom_call.1} parent=5 // pred_region
        %s245 = ssub.s32 %s17, 1
        // Predicated region
        $region13: #{tpu_custom_call.1} parent=11 // pred_check
          %p246 = pneg %p142
        $region14: #{tpu_custom_call.1} parent=11 // pred_check_branch
          %248 = sbr.rel (%p246) target = $region16
        $region15: #{tpu_custom_call.1} parent=11 // pred_region
          _
        $region16: #{tpu_custom_call.1} parent=11 // pred_fallthru
          _
        // Predicated region
        $region17: #{tpu_custom_call.1} parent=11 // pred_check
          %p249 = pneg %p163
        $region18: #{tpu_custom_call.1} parent=11 // pred_check_branch
          %251 = sbr.rel (%p249) target = $region20
        $region19: #{tpu_custom_call.1} parent=11 // pred_region
          _
        $region20: #{tpu_custom_call.1} parent=11 // pred_fallthru
          _
        // Predicated region
        $region21: #{tpu_custom_call.1} parent=11 // pred_check
          %p252 = pneg %p184
        $region22: #{tpu_custom_call.1} parent=11 // pred_check_branch
          %254 = sbr.rel (%p252) target = $region24
        $region23: #{tpu_custom_call.1} parent=11 // pred_region
          _
        $region24: #{tpu_custom_call.1} parent=11 // pred_fallthru
          _
        // Predicated region
        $region25: #{tpu_custom_call.1} parent=11 // pred_check
          %p255 = pneg %p205
        $region26: #{tpu_custom_call.1} parent=11 // pred_check_branch
          %257 = sbr.rel (%p255) target = $region28
        $region27: #{tpu_custom_call.1} parent=11 // pred_region
          _
        $region28: #{tpu_custom_call.1} parent=11 // pred_fallthru
          _
      $region12: #{tpu_custom_call.1} parent=5 // pred_fallthru
        _
      %p258 = scmp.lt.s32.totalorder %s17, 2
      // Predicated region
      $region29: #{tpu_custom_call.1} parent=5 // pred_check
        %p259 = pneg %p258
      $region30: #{tpu_custom_call.1} parent=5 // pred_check_branch
        %261 = sbr.rel (%p259) target = $region32
      $region31: #{tpu_custom_call.1} parent=5 // pred_region
        // Predicated region
        $region33: #{tpu_custom_call.1} parent=31 // pred_check
          %p262 = pneg %p37
        $region34: #{tpu_custom_call.1} parent=31 // pred_check_branch
          %264 = sbr.rel (%p262) target = $region36
        $region35: #{tpu_custom_call.1} parent=31 // pred_region
          %s265 = smul.u32 2, %s17
          %p266 = scmp.lt.s32.totalorder %s265, 3
          %s267 = scalar_select %p266, %s265, 3
          %s268 = smul.addr %s267, 8
          %s269 = scalar_lea.vmem %s0, %s268
          %s270 = smul.u32 2, %s17
        $region36: #{tpu_custom_call.1} parent=31 // pred_fallthru
          _
        // Predicated region
        $region37: #{tpu_custom_call.1} parent=31 // pred_check
          %p271 = pneg %p63
        $region38: #{tpu_custom_call.1} parent=31 // pred_check_branch
          %273 = sbr.rel (%p271) target = $region40
        $region39: #{tpu_custom_call.1} parent=31 // pred_region
          %s274 = smul.u32 2, %s17
          %p275 = scmp.lt.s32.totalorder %s274, 3
          %s276 = scalar_select %p275, %s274, 3
          %s277 = smul.addr %s276, 8
          %s278 = scalar_lea.vmem %s1, %s277
          %s279 = smul.u32 2, %s17
        $region40: #{tpu_custom_call.1} parent=31 // pred_fallthru
          _
        // Predicated region
        $region41: #{tpu_custom_call.1} parent=31 // pred_check
          %p280 = pneg %p89
        $region42: #{tpu_custom_call.1} parent=31 // pred_check_branch
          %282 = sbr.rel (%p280) target = $region44
        $region43: #{tpu_custom_call.1} parent=31 // pred_region
          %s283 = smul.u32 2, %s17
          %p284 = scmp.lt.s32.totalorder %s283, 3
          %s285 = scalar_select %p284, %s283, 3
          %s286 = smul.addr %s285, 8
          %s287 = scalar_lea.vmem %s2, %s286
          %s288 = smul.u32 2, %s17
        $region44: #{tpu_custom_call.1} parent=31 // pred_fallthru
          _
        // Predicated region
        $region45: #{tpu_custom_call.1} parent=31 // pred_check
          %p289 = pneg %p115
        $region46: #{tpu_custom_call.1} parent=31 // pred_check_branch
          %291 = sbr.rel (%p289) target = $region48
        $region47: #{tpu_custom_call.1} parent=31 // pred_region
          %s292 = smul.u32 2, %s17
          %p293 = scmp.lt.s32.totalorder %s292, 3
          %s294 = scalar_select %p293, %s292, 3
          %s295 = smul.addr %s294, 8
          %s296 = scalar_lea.vmem %s3, %s295
          %s297 = smul.u32 2, %s17
        $region48: #{tpu_custom_call.1} parent=31 // pred_fallthru
          _
      $region32: #{tpu_custom_call.1} parent=5 // pred_fallthru
        _
      %p298 = scmp.le.s32.totalorder 1, %s17
      %p299 = scmp.lt.s32.totalorder %s17, 3
      %p300 = pnand %p298, %p299
      %p301 = pneg %p300
      // Predicated region
      $region49: #{tpu_custom_call.1} parent=5 // pred_check
        _
      $region50: #{tpu_custom_call.1} parent=5 // pred_check_branch
        %303 = sbr.rel (%p300) target = $region52
      $region51: #{tpu_custom_call.1} parent=5 // pred_region
        %s304 = ssub.s32 %s17, 1
        %s305 = smul.u32 2, %s22
        %p306 = scmp.lt.s32.totalorder %s305, 3
        %s307 = scalar_select %p306, %s305, 3
        %s308 = smul.addr %s307, 8
        %s309 = scalar_lea.vmem %s0, %s308
        %p310 = pneg %p43
        %p311 = pneg %p40
        %s312 = smul.u32 2, %s22
        %p313 = scmp.lt.s32.totalorder %s312, 3
        %s314 = scalar_select %p313, %s312, 3
        %s315 = smul.addr %s314, 8
        %s316 = scalar_lea.vmem %s1, %s315
        %p317 = pneg %p69
        %p318 = pneg %p66
        %s319 = smul.u32 2, %s22
        %p320 = scmp.lt.s32.totalorder %s319, 3
        %s321 = scalar_select %p320, %s319, 3
        %s322 = smul.addr %s321, 8
        %s323 = scalar_lea.vmem %s2, %s322
        %p324 = pneg %p95
        %p325 = pneg %p92
        %s326 = smul.u32 2, %s22
        %p327 = scmp.lt.s32.totalorder %s326, 3
        %s328 = scalar_select %p327, %s326, 3
        %s329 = smul.addr %s328, 8
        %s330 = scalar_lea.vmem %s3, %s329
        %p331 = pneg %p121
        %p332 = pneg %p118
        %p333 = pneg %p142
        %p334 = pneg %p139
        %p335 = pneg %p163
        %p336 = pneg %p160
        %p337 = pneg %p184
        %p338 = pneg %p181
        %p339 = pneg %p205
        %p340 = pneg %p202
        %p341 = pneg %p231
        %p342 = pneg %p228
        %s343 = sand.u32 %s218, 1
        %s344 = scalar_lea.sflag [#allocation3], %s343
        %s345 = sand.u32 %s218, 1
        %s346 = smul.addr %s345, 16
        %s347 = scalar_lea.vmem [#allocation2], %s346
        %s348 = smul.u32 2, %s22
        %p349 = scmp.lt.s32.totalorder %s348, 3
        %s350 = scalar_select %p349, %s348, 3
        %s351 = smul.addr %s350, 8
        %s352 = scalar_lea.vmem %s0, %s351
        %s353 = smul.u32 2, %s22
        %s354 = smul.u32 2, %s22
        %p355 = scmp.lt.s32.totalorder %s354, 3
        %s356 = scalar_select %p355, %s354, 3
        %s357 = smul.addr %s356, 8
        %s358 = scalar_lea.vmem %s1, %s357
        %s359 = smul.u32 2, %s22
        %s360 = smul.u32 2, %s22
        %p361 = scmp.lt.s32.totalorder %s360, 3
        %s362 = scalar_select %p361, %s360, 3
        %s363 = smul.addr %s362, 8
        %s364 = scalar_lea.vmem %s2, %s363
        %s365 = smul.u32 2, %s22
        %s366 = smul.u32 2, %s22
        %p367 = scmp.lt.s32.totalorder %s366, 3
        %s368 = scalar_select %p367, %s366, 3
        %s369 = smul.addr %s368, 8
        %s370 = scalar_lea.vmem %s3, %s369
        %s371 = smul.u32 2, %s22
        %s372 = smul.u32 2, %s22
        %v373 = vld [vmem:[%s352] sm:$0xff]
        %v374 = vld [vmem:[%s352 + $0x8] sm:$0xff]
        %v375 = vld [vmem:[%s358] sm:$0xff]
        %v376 = vld [vmem:[%s358 + $0x8] sm:$0xff]
        %v377 = vld [vmem:[%s364] sm:$0xff]
        %v378 = vld [vmem:[%s364 + $0x8] sm:$0xff]
        %v379 = vld [vmem:[%s5] sm:$0xff]
        %v380 = vld [vmem:[%s5 + $0x8] sm:$0xff]
        %v381 = vld [vmem:[%s5 + $0x10] sm:$0xff]
        %v382 = vld [vmem:[%s5 + $0x18] sm:$0xff]
        %v383 = vld [vmem:[%s5 + $0x20] sm:$0xf]
        %v384 = vld [vmem:[%s5 + $0x28] sm:$0xff]
        %v385 = vld [vmem:[%s5 + $0x30] sm:$0xff]
        %v386 = vld [vmem:[%s5 + $0x38] sm:$0xff]
        %v387 = vld [vmem:[%s5 + $0x40] sm:$0xff]
        %v388 = vld [vmem:[%s5 + $0x48] sm:$0xf]
        %v389 = vld [vmem:[%s5 + $0x50] sm:$0xff]
        %v390 = vld [vmem:[%s5 + $0x58] sm:$0xff]
        %v391 = vld [vmem:[%s5 + $0x60] sm:$0xff]
        %v392 = vld [vmem:[%s5 + $0x68] sm:$0xff]
        %v393 = vld [vmem:[%s5 + $0x70] sm:$0xf]
        %v394 = vld [vmem:[%s5 + $0x78] sm:$0xff]
        %v395 = vld [vmem:[%s5 + $0x80] sm:$0xff]
        %v396 = vld [vmem:[%s5 + $0x88] sm:$0xff]
        %v397 = vld [vmem:[%s5 + $0x90] sm:$0xff]
        %v398 = vld [vmem:[%s5 + $0x98] sm:$0xf]
        %v399 = vld [vmem:[%s5 + $0xa0] sm:$0xff]
        %v400 = vld [vmem:[%s5 + $0xa8] sm:$0xff]
        %v401 = vld [vmem:[%s5 + $0xb0] sm:$0xff]
        %v402 = vld [vmem:[%s5 + $0xb8] sm:$0xff]
        %v403 = vld [vmem:[%s5 + $0xc0] sm:$0xf]
        %v404 = vld [vmem:[%s5 + $0xc8] sm:$0xff]
        %v405 = vld [vmem:[%s5 + $0xd0] sm:$0xff]
        %v406 = vld [vmem:[%s5 + $0xd8] sm:$0xff]
        %v407 = vld [vmem:[%s5 + $0xe0] sm:$0xff]
        %v408 = vld [vmem:[%s5 + $0xe8] sm:$0xf]
        %v409 = vld [vmem:[%s5 + $0xf0] sm:$0xff]
        %v410 = vld [vmem:[%s5 + $0xf8] sm:$0xff]
        %v411 = vld [vmem:[%s5 + $0x100] sm:$0xff]
        %v412 = vld [vmem:[%s5 + $0x108] sm:$0xff]
        %v413 = vld [vmem:[%s5 + $0x110] sm:$0xf]
        %v414 = vld [vmem:[%s5 + $0x118] sm:$0xff]
        %v415 = vld [vmem:[%s5 + $0x120] sm:$0xff]
        %v416 = vld [vmem:[%s5 + $0x128] sm:$0xff]
        %v417 = vld [vmem:[%s5 + $0x130] sm:$0xff]
        %v418 = vld [vmem:[%s5 + $0x138] sm:$0xf]
        %v419 = vld [vmem:[%s5 + $0x140] sm:$0xff]
        %v420 = vld [vmem:[%s5 + $0x148] sm:$0xff]
        %v421 = vld [vmem:[%s5 + $0x150] sm:$0xff]
        %v422 = vld [vmem:[%s5 + $0x158] sm:$0xff]
        %v423 = vld [vmem:[%s5 + $0x160] sm:$0xf]
        %v424 = vld [vmem:[%s6] sm:$0xff]
        %v425 = vld [vmem:[%s6 + $0x8] sm:$0xff]
        %v426 = vld [vmem:[%s6 + $0x10] sm:$0xff]
        %v427 = vld [vmem:[%s6 + $0x18] sm:$0xff]
        %v428 = vld [vmem:[%s6 + $0x20] sm:$0xff]
        %v429 = vld [vmem:[%s6 + $0x28] sm:$0xff]
        %v430 = vld [vmem:[%s6 + $0x30] sm:$0xff]
        %v431 = vld [vmem:[%s6 + $0x38] sm:$0xff]
        %v432 = vld [vmem:[%s6 + $0x40] sm:$0xff]
        %v433 = vld [vmem:[%s6 + $0x48] sm:$0xff]
        %v434 = vld [vmem:[%s6 + $0x50] sm:$0xff]
        %v435 = vld [vmem:[%s6 + $0x58] sm:$0xff]
        %v436 = vld [vmem:[%s7] sm:$0x1]
        %v437 = vld [vmem:[%s7 + $0x1] sm:$0x1]
        %v438 = vld [vmem:[%s7 + $0x2] sm:$0x1]
        %v439 = vld [vmem:[%s4] sm:$0xff]
        %v440 = vld [vmem:[%s4 + $0x8] sm:$0xff]
        %vm441 = vcmask 130048
        %v443 = vsel %vm441, %v373, 0
        %v446 = vsel %vm441, %v374, 0
        %448 = vmatprep.subr.mxu0 0.0
        %449 = vmatpush1.msra.mxu0 0.0
        %450 = vmatprep.subr.mxu0 0.0
        %451 = vmatpush1.msra.mxu0 0.0
        %452 = vmatprep.subr.mxu0 0.0
        %453 = vmatpush1.msra.mxu0 0.0
        %454 = vmatprep.subr.mxu0 0.0
        %455 = vmatpush1.msra.mxu0 0.0
        %456 = vmatprep.subr.mxu0 0.0
        %457 = vmatpush1.msra.mxu0 0.0
        %458 = vmatprep.subr.mxu0 0.0
        %459 = vmatpush1.msra.mxu0 0.0
        %460 = vmatprep.subr.mxu0 0.0
        %461 = vmatpush1.msra.mxu0 0.0
        %462 = vmatprep.subr.mxu0 0.0
        %463 = vmatpush1.msra.mxu0 0.0
        %464 = vmatprep.subr.mxu0 0.0
        %465 = vmatpush1.msra.mxu0 0.0
        %466 = vmatprep.subr.mxu0 0.0
        %467 = vmatpush1.msra.mxu0 0.0
        %468 = vmatprep.subr.mxu0 0.0
        %469 = vmatpush1.msra.mxu0 0.0
        %470 = vmatprep.subr.mxu0 0.0
        %471 = vmatpush1.msra.mxu0 0.0
        %472 = vmatprep.subr.mxu0 0.0
        %473 = vmatpush1.msra.mxu0 0.0
        %474 = vmatprep.subr.mxu0 0.0
        %475 = vmatpush1.msra.mxu0 0.0
        %476 = vmatprep.subr.mxu0 0.0
        %477 = vmatpush1.msra.mxu0 %v440
        %478 = vmatprep.subr.mxu0 0.0
        %479 = vmatpush1.msra.mxu0 %v439
        %480 = vmatprep.subr.mxu0 0.0
        %481 = vmatpush2.msra.mxu0 0.0
        %482 = vmatprep.subr.mxu0 0.0
        %483 = vmatpush2.msra.mxu0 0.0
        %484 = vmatprep.subr.mxu0 0.0
        %485 = vmatpush2.msra.mxu0 0.0
        %486 = vmatprep.subr.mxu0 0.0
        %487 = vmatpush2.msra.mxu0 0.0
        %488 = vmatprep.subr.mxu0 0.0
        %489 = vmatpush2.msra.mxu0 0.0
        %490 = vmatprep.subr.mxu0 0.0
        %491 = vmatpush2.msra.mxu0 0.0
        %492 = vmatprep.subr.mxu0 0.0
        %493 = vmatpush2.msra.mxu0 0.0
        %494 = vmatprep.subr.mxu0 0.0
        %495 = vmatpush2.msra.mxu0 0.0
        %496 = vmatprep.subr.mxu0 0.0
        %497 = vmatpush2.msra.mxu0 0.0
        %498 = vmatprep.subr.mxu0 0.0
        %499 = vmatpush2.msra.mxu0 0.0
        %500 = vmatprep.subr.mxu0 0.0
        %501 = vmatpush2.msra.mxu0 0.0
        %502 = vmatprep.subr.mxu0 0.0
        %503 = vmatpush2.msra.mxu0 0.0
        %504 = vmatprep.subr.mxu0 0.0
        %505 = vmatpush2.msra.mxu0 0.0
        %506 = vmatprep.subr.mxu0 0.0
        %507 = vmatpush2.msra.mxu0 0.0
        %508 = vmatprep.subr.mxu0 0.0
        %509 = vmatpush2.msra.mxu0 0.0
        %510 = vmatprep.subr.mxu0 0.0
        %511 = vmatpush2.msra.mxu0 0.0
        %512 = vmatprep.mubr.f32.mxu0 0.0
        %513 = vmatmul.mubr.f32.gmra.mxu0 %v443
        %v514 = vpop.f32.mrf.mxu0
        %v515 = vadd.f32 0.0, %v514
        %v516 = vpop.f32.mrf.mxu0
        %517 = vmatprep.mubr.f32.mxu0 0.0
        %518 = vmatmul.mubr.f32.gmra.mxu0 %v446
        %v519 = vpop.f32.mrf.mxu0
        %v520 = vadd.f32 0.0, %v519
        %v521 = vpop.f32.mrf.mxu0
        %522 = vdwg.mxu0
        %v523 = vld [vmem:[%s370] sm:$0xff]
        %v524 = vld [vmem:[%s370 + $0x8] sm:$0xff]
        %525 = vmatprep.subr.mxu0 0.0
        %526 = vmatpush1.msra.mxu0 0.0
        %527 = vmatprep.subr.mxu0 0.0
        %528 = vmatpush1.msra.mxu0 0.0
        %529 = vmatprep.subr.mxu0 0.0
        %530 = vmatpush1.msra.mxu0 0.0
        %531 = vmatprep.subr.mxu0 0.0
        %532 = vmatpush1.msra.mxu0 0.0
        %533 = vmatprep.subr.mxu0 0.0
        %534 = vmatpush1.msra.mxu0 0.0
        %535 = vmatprep.subr.mxu0 0.0
        %536 = vmatpush1.msra.mxu0 0.0
        %537 = vmatprep.subr.mxu0 0.0
        %538 = vmatpush1.msra.mxu0 0.0
        %539 = vmatprep.subr.mxu0 0.0
        %540 = vmatpush1.msra.mxu0 0.0
        %541 = vmatprep.subr.mxu0 0.0
        %542 = vmatpush1.msra.mxu0 0.0
        %543 = vmatprep.subr.mxu0 0.0
        %544 = vmatpush1.msra.mxu0 0.0
        %545 = vmatprep.subr.mxu0 0.0
        %546 = vmatpush1.msra.mxu0 0.0
        %547 = vmatprep.subr.mxu0 0.0
        %548 = vmatpush1.msra.mxu0 0.0
        %549 = vmatprep.subr.mxu0 0.0
        %550 = vmatpush1.msra.mxu0 0.0
        %551 = vmatprep.subr.mxu0 0.0
        %552 = vmatpush1.msra.mxu0 0.0
        %553 = vmatprep.subr.mxu0 0.0
        %554 = vmatpush1.msra.mxu0 %v524
        %555 = vmatprep.subr.mxu0 0.0
        %556 = vmatpush1.msra.mxu0 %v523
        %557 = vmatprep.subr.mxu0 0.0
        %558 = vmatpush2.msra.mxu0 0.0
        %559 = vmatprep.subr.mxu0 0.0
        %560 = vmatpush2.msra.mxu0 0.0
        %561 = vmatprep.subr.mxu0 0.0
        %562 = vmatpush2.msra.mxu0 0.0
        %563 = vmatprep.subr.mxu0 0.0
        %564 = vmatpush2.msra.mxu0 0.0
        %565 = vmatprep.subr.mxu0 0.0
        %566 = vmatpush2.msra.mxu0 0.0
        %567 = vmatprep.subr.mxu0 0.0
        %568 = vmatpush2.msra.mxu0 0.0
        %569 = vmatprep.subr.mxu0 0.0
        %570 = vmatpush2.msra.mxu0 0.0
        %571 = vmatprep.subr.mxu0 0.0
        %572 = vmatpush2.msra.mxu0 0.0
        %573 = vmatprep.subr.mxu0 0.0
        %574 = vmatpush2.msra.mxu0 0.0
        %575 = vmatprep.subr.mxu0 0.0
        %576 = vmatpush2.msra.mxu0 0.0
        %577 = vmatprep.subr.mxu0 0.0
        %578 = vmatpush2.msra.mxu0 0.0
        %579 = vmatprep.subr.mxu0 0.0
        %580 = vmatpush2.msra.mxu0 0.0
        %581 = vmatprep.subr.mxu0 0.0
        %582 = vmatpush2.msra.mxu0 0.0
        %583 = vmatprep.subr.mxu0 0.0
        %584 = vmatpush2.msra.mxu0 0.0
        %585 = vmatprep.subr.mxu0 0.0
        %586 = vmatpush2.msra.mxu0 0.0
        %587 = vmatprep.subr.mxu0 0.0
        %588 = vmatpush2.msra.mxu0 0.0
        %589 = vmatprep.mubr.f32.mxu0 0.0
        %590 = vmatmul.mubr.f32.gmra.mxu0 %v443
        %v591 = vpop.f32.mrf.mxu0
        %v592 = vadd.f32 0.0, %v591
        %v593 = vpop.f32.mrf.mxu0
        %594 = vmatprep.mubr.f32.mxu0 0.0
        %595 = vmatmul.mubr.f32.gmra.mxu0 %v446
        %v596 = vpop.f32.mrf.mxu0
        %v597 = vadd.f32 0.0, %v596
        %v598 = vpop.f32.mrf.mxu0
        %599 = vdwg.mxu0
        %v601 = vsel %vm441, %v592, 0
        %v604 = vsel %vm441, %v597, 0
        %606 = vmatprep.subr.mxu0 0.0
        %607 = vmatpush1.msra.mxu0 0.0
        %608 = vmatprep.subr.mxu0 0.0
        %609 = vmatpush1.msra.mxu0 0.0
        %610 = vmatprep.subr.mxu0 0.0
        %611 = vmatpush1.msra.mxu0 0.0
        %612 = vmatprep.subr.mxu0 0.0
        %613 = vmatpush1.msra.mxu0 0.0
        %614 = vmatprep.subr.mxu0 0.0
        %615 = vmatpush1.msra.mxu0 0.0
        %616 = vmatprep.subr.mxu0 0.0
        %617 = vmatpush1.msra.mxu0 0.0
        %618 = vmatprep.subr.mxu0 0.0
        %619 = vmatpush1.msra.mxu0 0.0
        %620 = vmatprep.subr.mxu0 0.0
        %621 = vmatpush1.msra.mxu0 0.0
        %622 = vmatprep.subr.mxu0 0.0
        %623 = vmatpush1.msra.mxu0 0.0
        %624 = vmatprep.subr.mxu0 0.0
        %625 = vmatpush1.msra.mxu0 0.0
        %626 = vmatprep.subr.mxu0 0.0
        %627 = vmatpush1.msra.mxu0 0.0
        %628 = vmatprep.subr.mxu0 0.0
        %629 = vmatpush1.msra.mxu0 0.0
        %630 = vmatprep.subr.mxu0 0.0
        %631 = vmatpush1.msra.mxu0 0.0
        %632 = vmatprep.subr.mxu0 0.0
        %633 = vmatpush1.msra.mxu0 0.0
        %634 = vmatprep.subr.mxu0 0.0
        %635 = vmatpush1.msra.mxu0 %v376
        %636 = vmatprep.subr.mxu0 0.0
        %637 = vmatpush1.msra.mxu0 %v375
        %638 = vmatprep.subr.mxu0 0.0
        %639 = vmatpush2.msra.mxu0 0.0
        %640 = vmatprep.subr.mxu0 0.0
        %641 = vmatpush2.msra.mxu0 0.0
        %642 = vmatprep.subr.mxu0 0.0
        %643 = vmatpush2.msra.mxu0 0.0
        %644 = vmatprep.subr.mxu0 0.0
        %645 = vmatpush2.msra.mxu0 0.0
        %646 = vmatprep.subr.mxu0 0.0
        %647 = vmatpush2.msra.mxu0 0.0
        %648 = vmatprep.subr.mxu0 0.0
        %649 = vmatpush2.msra.mxu0 0.0
        %650 = vmatprep.subr.mxu0 0.0
        %651 = vmatpush2.msra.mxu0 0.0
        %652 = vmatprep.subr.mxu0 0.0
        %653 = vmatpush2.msra.mxu0 0.0
        %654 = vmatprep.subr.mxu0 0.0
        %655 = vmatpush2.msra.mxu0 0.0
        %656 = vmatprep.subr.mxu0 0.0
        %657 = vmatpush2.msra.mxu0 0.0
        %658 = vmatprep.subr.mxu0 0.0
        %659 = vmatpush2.msra.mxu0 0.0
        %660 = vmatprep.subr.mxu0 0.0
        %661 = vmatpush2.msra.mxu0 0.0
        %662 = vmatprep.subr.mxu0 0.0
        %663 = vmatpush2.msra.mxu0 0.0
        %664 = vmatprep.subr.mxu0 0.0
        %665 = vmatpush2.msra.mxu0 0.0
        %666 = vmatprep.subr.mxu0 0.0
        %667 = vmatpush2.msra.mxu0 0.0
        %668 = vmatprep.subr.mxu0 0.0
        %669 = vmatpush2.msra.mxu0 0.0
        %670 = vmatprep.mubr.f32.mxu0 0.0
        %671 = vmatmul.mubr.f32.gmra.mxu0 %v601
        %v672 = vpop.f32.mrf.mxu0
        %v673 = vadd.f32 0.0, %v672
        %v674 = vpop.f32.mrf.mxu0
        %675 = vmatprep.mubr.f32.mxu0 0.0
        %676 = vmatmul.mubr.f32.gmra.mxu0 %v604
        %v677 = vpop.f32.mrf.mxu0
        %v678 = vadd.f32 0.0, %v677
        %v679 = vpop.f32.mrf.mxu0
        %680 = vdwg.mxu0
        %v682 = vsel %vm441, %v515, 0
        %v685 = vsel %vm441, %v520, 0
        %687 = vmatprep.subr.mxu0 0.0
        %688 = vmatpush1.msra.mxu0 0.0
        %689 = vmatprep.subr.mxu0 0.0
        %690 = vmatpush1.msra.mxu0 0.0
        %691 = vmatprep.subr.mxu0 0.0
        %692 = vmatpush1.msra.mxu0 0.0
        %693 = vmatprep.subr.mxu0 0.0
        %694 = vmatpush1.msra.mxu0 0.0
        %695 = vmatprep.subr.mxu0 0.0
        %696 = vmatpush1.msra.mxu0 0.0
        %697 = vmatprep.subr.mxu0 0.0
        %698 = vmatpush1.msra.mxu0 0.0
        %699 = vmatprep.subr.mxu0 0.0
        %700 = vmatpush1.msra.mxu0 0.0
        %701 = vmatprep.subr.mxu0 0.0
        %702 = vmatpush1.msra.mxu0 0.0
        %703 = vmatprep.subr.mxu0 0.0
        %704 = vmatpush1.msra.mxu0 0.0
        %705 = vmatprep.subr.mxu0 0.0
        %706 = vmatpush1.msra.mxu0 0.0
        %707 = vmatprep.subr.mxu0 0.0
        %708 = vmatpush1.msra.mxu0 0.0
        %709 = vmatprep.subr.mxu0 0.0
        %710 = vmatpush1.msra.mxu0 0.0
        %711 = vmatprep.subr.mxu0 0.0
        %712 = vmatpush1.msra.mxu0 0.0
        %713 = vmatprep.subr.mxu0 0.0
        %714 = vmatpush1.msra.mxu0 0.0
        %715 = vmatprep.subr.mxu0 0.0
        %716 = vmatpush1.msra.mxu0 %v376
        %717 = vmatprep.subr.mxu0 0.0
        %718 = vmatpush1.msra.mxu0 %v375
        %719 = vmatprep.subr.mxu0 0.0
        %720 = vmatpush2.msra.mxu0 0.0
        %721 = vmatprep.subr.mxu0 0.0
        %722 = vmatpush2.msra.mxu0 0.0
        %723 = vmatprep.subr.mxu0 0.0
        %724 = vmatpush2.msra.mxu0 0.0
        %725 = vmatprep.subr.mxu0 0.0
        %726 = vmatpush2.msra.mxu0 0.0
        %727 = vmatprep.subr.mxu0 0.0
        %728 = vmatpush2.msra.mxu0 0.0
        %729 = vmatprep.subr.mxu0 0.0
        %730 = vmatpush2.msra.mxu0 0.0
        %731 = vmatprep.subr.mxu0 0.0
        %732 = vmatpush2.msra.mxu0 0.0
        %733 = vmatprep.subr.mxu0 0.0
        %734 = vmatpush2.msra.mxu0 0.0
        %735 = vmatprep.subr.mxu0 0.0
        %736 = vmatpush2.msra.mxu0 0.0
        %737 = vmatprep.subr.mxu0 0.0
        %738 = vmatpush2.msra.mxu0 0.0
        %739 = vmatprep.subr.mxu0 0.0
        %740 = vmatpush2.msra.mxu0 0.0
        %741 = vmatprep.subr.mxu0 0.0
        %742 = vmatpush2.msra.mxu0 0.0
        %743 = vmatprep.subr.mxu0 0.0
        %744 = vmatpush2.msra.mxu0 0.0
        %745 = vmatprep.subr.mxu0 0.0
        %746 = vmatpush2.msra.mxu0 0.0
        %747 = vmatprep.subr.mxu0 0.0
        %748 = vmatpush2.msra.mxu0 0.0
        %749 = vmatprep.subr.mxu0 0.0
        %750 = vmatpush2.msra.mxu0 0.0
        %751 = vmatprep.mubr.f32.mxu0 0.0
        %752 = vmatmul.mubr.f32.gmra.mxu0 %v682
        %v753 = vpop.f32.mrf.mxu0
        %v754 = vadd.f32 0.0, %v753
        %v755 = vpop.f32.mrf.mxu0
        %756 = vmatprep.mubr.f32.mxu0 0.0
        %757 = vmatmul.mubr.f32.gmra.mxu0 %v685
        %v758 = vpop.f32.mrf.mxu0
        %v759 = vadd.f32 0.0, %v758
        %v760 = vpop.f32.mrf.mxu0
        %761 = vdwg.mxu0
        %vm762 = vcmask 293888
        %v764 = vsel %vm762, %v754, 0
        %v767 = vsel %vm762, %v759, 0
        %vm769 = vcmask 1043456
        %v771 = vsel %vm769, %v388, 0
        %773 = vmatprep.subr.mxu0 0.0
        %774 = vmatpush1.msra.mxu0 0.0
        %775 = vmatprep.subr.mxu0 0.0
        %776 = vmatpush1.msra.mxu0 0.0
        %777 = vmatprep.subr.mxu0 0.0
        %778 = vmatpush1.msra.mxu0 0.0
        %779 = vmatprep.subr.mxu0 0.0
        %780 = vmatpush1.msra.mxu0 0.0
        %781 = vmatprep.subr.mxu0 0.0
        %782 = vmatpush1.msra.mxu0 0.0
        %783 = vmatprep.subr.mxu0 0.0
        %784 = vmatpush1.msra.mxu0 0.0
        %785 = vmatprep.subr.mxu0 0.0
        %786 = vmatpush1.msra.mxu0 0.0
        %787 = vmatprep.subr.mxu0 0.0
        %788 = vmatpush1.msra.mxu0 0.0
        %789 = vmatprep.subr.mxu0 0.0
        %790 = vmatpush1.msra.mxu0 0.0
        %791 = vmatprep.subr.mxu0 0.0
        %792 = vmatpush1.msra.mxu0 0.0
        %793 = vmatprep.subr.mxu0 0.0
        %794 = vmatpush1.msra.mxu0 0.0
        %795 = vmatprep.subr.mxu0 0.0
        %796 = vmatpush1.msra.mxu0 %v771
        %797 = vmatprep.subr.mxu0 0.0
        %798 = vmatpush1.msra.mxu0 %v387
        %799 = vmatprep.subr.mxu0 0.0
        %800 = vmatpush1.msra.mxu0 %v386
        %801 = vmatprep.subr.mxu0 0.0
        %802 = vmatpush1.msra.mxu0 %v385
        %803 = vmatprep.subr.mxu0 0.0
        %804 = vmatpush1.msra.mxu0 %v384
        %805 = vmatprep.subr.mxu0 0.0
        %806 = vmatpush2.msra.mxu0 0.0
        %807 = vmatprep.subr.mxu0 0.0
        %808 = vmatpush2.msra.mxu0 0.0
        %809 = vmatprep.subr.mxu0 0.0
        %810 = vmatpush2.msra.mxu0 0.0
        %811 = vmatprep.subr.mxu0 0.0
        %812 = vmatpush2.msra.mxu0 0.0
        %813 = vmatprep.subr.mxu0 0.0
        %814 = vmatpush2.msra.mxu0 0.0
        %815 = vmatprep.subr.mxu0 0.0
        %816 = vmatpush2.msra.mxu0 0.0
        %817 = vmatprep.subr.mxu0 0.0
        %818 = vmatpush2.msra.mxu0 0.0
        %819 = vmatprep.subr.mxu0 0.0
        %820 = vmatpush2.msra.mxu0 0.0
        %821 = vmatprep.subr.mxu0 0.0
        %822 = vmatpush2.msra.mxu0 0.0
        %823 = vmatprep.subr.mxu0 0.0
        %824 = vmatpush2.msra.mxu0 0.0
        %825 = vmatprep.subr.mxu0 0.0
        %826 = vmatpush2.msra.mxu0 0.0
        %827 = vmatprep.subr.mxu0 0.0
        %828 = vmatpush2.msra.mxu0 0.0
        %829 = vmatprep.subr.mxu0 0.0
        %830 = vmatpush2.msra.mxu0 0.0
        %831 = vmatprep.subr.mxu0 0.0
        %832 = vmatpush2.msra.mxu0 0.0
        %833 = vmatprep.subr.mxu0 0.0
        %834 = vmatpush2.msra.mxu0 0.0
        %835 = vmatprep.subr.mxu0 0.0
        %836 = vmatpush2.msra.mxu0 0.0
        %837 = vmatprep.mubr.f32.mxu0 0.0
        %838 = vmatmul.mubr.f32.gmra.mxu0 %v764
        %v839 = vpop.f32.mrf.mxu0
        %v840 = vadd.f32 0.0, %v839
        %v841 = vpop.f32.mrf.mxu0
        %842 = vmatprep.mubr.f32.mxu0 0.0
        %843 = vmatmul.mubr.f32.gmra.mxu0 %v767
        %v844 = vpop.f32.mrf.mxu0
        %v845 = vadd.f32 0.0, %v844
        %v846 = vpop.f32.mrf.mxu0
        %847 = vdwg.mxu0
        %v849 = vsel %vm762, %v673, 0
        %v852 = vsel %vm762, %v678, 0
        %v855 = vsel %vm769, %v383, 0
        %857 = vmatprep.subr.mxu0 0.0
        %858 = vmatpush1.msra.mxu0 0.0
        %859 = vmatprep.subr.mxu0 0.0
        %860 = vmatpush1.msra.mxu0 0.0
        %861 = vmatprep.subr.mxu0 0.0
        %862 = vmatpush1.msra.mxu0 0.0
        %863 = vmatprep.subr.mxu0 0.0
        %864 = vmatpush1.msra.mxu0 0.0
        %865 = vmatprep.subr.mxu0 0.0
        %866 = vmatpush1.msra.mxu0 0.0
        %867 = vmatprep.subr.mxu0 0.0
        %868 = vmatpush1.msra.mxu0 0.0
        %869 = vmatprep.subr.mxu0 0.0
        %870 = vmatpush1.msra.mxu0 0.0
        %871 = vmatprep.subr.mxu0 0.0
        %872 = vmatpush1.msra.mxu0 0.0
        %873 = vmatprep.subr.mxu0 0.0
        %874 = vmatpush1.msra.mxu0 0.0
        %875 = vmatprep.subr.mxu0 0.0
        %876 = vmatpush1.msra.mxu0 0.0
        %877 = vmatprep.subr.mxu0 0.0
        %878 = vmatpush1.msra.mxu0 0.0
        %879 = vmatprep.subr.mxu0 0.0
        %880 = vmatpush1.msra.mxu0 %v855
        %881 = vmatprep.subr.mxu0 0.0
        %882 = vmatpush1.msra.mxu0 %v382
        %883 = vmatprep.subr.mxu0 0.0
        %884 = vmatpush1.msra.mxu0 %v381
        %885 = vmatprep.subr.mxu0 0.0
        %886 = vmatpush1.msra.mxu0 %v380
        %887 = vmatprep.subr.mxu0 0.0
        %888 = vmatpush1.msra.mxu0 %v379
        %889 = vmatprep.subr.mxu0 0.0
        %890 = vmatpush2.msra.mxu0 0.0
        %891 = vmatprep.subr.mxu0 0.0
        %892 = vmatpush2.msra.mxu0 0.0
        %893 = vmatprep.subr.mxu0 0.0
        %894 = vmatpush2.msra.mxu0 0.0
        %895 = vmatprep.subr.mxu0 0.0
        %896 = vmatpush2.msra.mxu0 0.0
        %897 = vmatprep.subr.mxu0 0.0
        %898 = vmatpush2.msra.mxu0 0.0
        %899 = vmatprep.subr.mxu0 0.0
        %900 = vmatpush2.msra.mxu0 0.0
        %901 = vmatprep.subr.mxu0 0.0
        %902 = vmatpush2.msra.mxu0 0.0
        %903 = vmatprep.subr.mxu0 0.0
        %904 = vmatpush2.msra.mxu0 0.0
        %905 = vmatprep.subr.mxu0 0.0
        %906 = vmatpush2.msra.mxu0 0.0
        %907 = vmatprep.subr.mxu0 0.0
        %908 = vmatpush2.msra.mxu0 0.0
        %909 = vmatprep.subr.mxu0 0.0
        %910 = vmatpush2.msra.mxu0 0.0
        %911 = vmatprep.subr.mxu0 0.0
        %912 = vmatpush2.msra.mxu0 0.0
        %913 = vmatprep.subr.mxu0 0.0
        %914 = vmatpush2.msra.mxu0 0.0
        %915 = vmatprep.subr.mxu0 0.0
        %916 = vmatpush2.msra.mxu0 0.0
        %917 = vmatprep.subr.mxu0 0.0
        %918 = vmatpush2.msra.mxu0 0.0
        %919 = vmatprep.subr.mxu0 0.0
        %920 = vmatpush2.msra.mxu0 0.0
        %921 = vmatprep.mubr.f32.mxu0 0.0
        %922 = vmatmul.mubr.f32.gmra.mxu0 %v849
        %v923 = vpop.f32.mrf.mxu0
        %v924 = vadd.f32 %v840, %v923
        %v925 = vpop.f32.mrf.mxu0
        %926 = vmatprep.mubr.f32.mxu0 0.0
        %927 = vmatmul.mubr.f32.gmra.mxu0 %v852
        %v928 = vpop.f32.mrf.mxu0
        %v929 = vadd.f32 %v845, %v928
        %v930 = vpop.f32.mrf.mxu0
        %931 = vdwg.mxu0
        %v933 = vsel %vm769, %v403, 0
        %935 = vmatprep.subr.mxu0 0.0
        %936 = vmatpush1.msra.mxu0 0.0
        %937 = vmatprep.subr.mxu0 0.0
        %938 = vmatpush1.msra.mxu0 0.0
        %939 = vmatprep.subr.mxu0 0.0
        %940 = vmatpush1.msra.mxu0 0.0
        %941 = vmatprep.subr.mxu0 0.0
        %942 = vmatpush1.msra.mxu0 0.0
        %943 = vmatprep.subr.mxu0 0.0
        %944 = vmatpush1.msra.mxu0 0.0
        %945 = vmatprep.subr.mxu0 0.0
        %946 = vmatpush1.msra.mxu0 0.0
        %947 = vmatprep.subr.mxu0 0.0
        %948 = vmatpush1.msra.mxu0 0.0
        %949 = vmatprep.subr.mxu0 0.0
        %950 = vmatpush1.msra.mxu0 0.0
        %951 = vmatprep.subr.mxu0 0.0
        %952 = vmatpush1.msra.mxu0 0.0
        %953 = vmatprep.subr.mxu0 0.0
        %954 = vmatpush1.msra.mxu0 0.0
        %955 = vmatprep.subr.mxu0 0.0
        %956 = vmatpush1.msra.mxu0 0.0
        %957 = vmatprep.subr.mxu0 0.0
        %958 = vmatpush1.msra.mxu0 %v933
        %959 = vmatprep.subr.mxu0 0.0
        %960 = vmatpush1.msra.mxu0 %v402
        %961 = vmatprep.subr.mxu0 0.0
        %962 = vmatpush1.msra.mxu0 %v401
        %963 = vmatprep.subr.mxu0 0.0
        %964 = vmatpush1.msra.mxu0 %v400
        %965 = vmatprep.subr.mxu0 0.0
        %966 = vmatpush1.msra.mxu0 %v399
        %967 = vmatprep.subr.mxu0 0.0
        %968 = vmatpush2.msra.mxu0 0.0
        %969 = vmatprep.subr.mxu0 0.0
        %970 = vmatpush2.msra.mxu0 0.0
        %971 = vmatprep.subr.mxu0 0.0
        %972 = vmatpush2.msra.mxu0 0.0
        %973 = vmatprep.subr.mxu0 0.0
        %974 = vmatpush2.msra.mxu0 0.0
        %975 = vmatprep.subr.mxu0 0.0
        %976 = vmatpush2.msra.mxu0 0.0
        %977 = vmatprep.subr.mxu0 0.0
        %978 = vmatpush2.msra.mxu0 0.0
        %979 = vmatprep.subr.mxu0 0.0
        %980 = vmatpush2.msra.mxu0 0.0
        %981 = vmatprep.subr.mxu0 0.0
        %982 = vmatpush2.msra.mxu0 0.0
        %983 = vmatprep.subr.mxu0 0.0
        %984 = vmatpush2.msra.mxu0 0.0
        %985 = vmatprep.subr.mxu0 0.0
        %986 = vmatpush2.msra.mxu0 0.0
        %987 = vmatprep.subr.mxu0 0.0
        %988 = vmatpush2.msra.mxu0 0.0
        %989 = vmatprep.subr.mxu0 0.0
        %990 = vmatpush2.msra.mxu0 0.0
        %991 = vmatprep.subr.mxu0 0.0
        %992 = vmatpush2.msra.mxu0 0.0
        %993 = vmatprep.subr.mxu0 0.0
        %994 = vmatpush2.msra.mxu0 0.0
        %995 = vmatprep.subr.mxu0 0.0
        %996 = vmatpush2.msra.mxu0 0.0
        %997 = vmatprep.subr.mxu0 0.0
        %998 = vmatpush2.msra.mxu0 0.0
        %999 = vmatprep.mubr.f32.mxu0 0.0
        %1000 = vmatmul.mubr.f32.gmra.mxu0 %v764
        %v1001 = vpop.f32.mrf.mxu0
        %v1002 = vadd.f32 0.0, %v1001
        %v1003 = vpop.f32.mrf.mxu0
        %1004 = vmatprep.mubr.f32.mxu0 0.0
        %1005 = vmatmul.mubr.f32.gmra.mxu0 %v767
        %v1006 = vpop.f32.mrf.mxu0
        %v1007 = vadd.f32 0.0, %v1006
        %v1008 = vpop.f32.mrf.mxu0
        %1009 = vdwg.mxu0
        %v1011 = vsel %vm769, %v398, 0
        %1013 = vmatprep.subr.mxu0 0.0
        %1014 = vmatpush1.msra.mxu0 0.0
        %1015 = vmatprep.subr.mxu0 0.0
        %1016 = vmatpush1.msra.mxu0 0.0
        %1017 = vmatprep.subr.mxu0 0.0
        %1018 = vmatpush1.msra.mxu0 0.0
        %1019 = vmatprep.subr.mxu0 0.0
        %1020 = vmatpush1.msra.mxu0 0.0
        %1021 = vmatprep.subr.mxu0 0.0
        %1022 = vmatpush1.msra.mxu0 0.0
        %1023 = vmatprep.subr.mxu0 0.0
        %1024 = vmatpush1.msra.mxu0 0.0
        %1025 = vmatprep.subr.mxu0 0.0
        %1026 = vmatpush1.msra.mxu0 0.0
        %1027 = vmatprep.subr.mxu0 0.0
        %1028 = vmatpush1.msra.mxu0 0.0
        %1029 = vmatprep.subr.mxu0 0.0
        %1030 = vmatpush1.msra.mxu0 0.0
        %1031 = vmatprep.subr.mxu0 0.0
        %1032 = vmatpush1.msra.mxu0 0.0
        %1033 = vmatprep.subr.mxu0 0.0
        %1034 = vmatpush1.msra.mxu0 0.0
        %1035 = vmatprep.subr.mxu0 0.0
        %1036 = vmatpush1.msra.mxu0 %v1011
        %1037 = vmatprep.subr.mxu0 0.0
        %1038 = vmatpush1.msra.mxu0 %v397
        %1039 = vmatprep.subr.mxu0 0.0
        %1040 = vmatpush1.msra.mxu0 %v396
        %1041 = vmatprep.subr.mxu0 0.0
        %1042 = vmatpush1.msra.mxu0 %v395
        %1043 = vmatprep.subr.mxu0 0.0
        %1044 = vmatpush1.msra.mxu0 %v394
        %1045 = vmatprep.subr.mxu0 0.0
        %1046 = vmatpush2.msra.mxu0 0.0
        %1047 = vmatprep.subr.mxu0 0.0
        %1048 = vmatpush2.msra.mxu0 0.0
        %1049 = vmatprep.subr.mxu0 0.0
        %1050 = vmatpush2.msra.mxu0 0.0
        %1051 = vmatprep.subr.mxu0 0.0
        %1052 = vmatpush2.msra.mxu0 0.0
        %1053 = vmatprep.subr.mxu0 0.0
        %1054 = vmatpush2.msra.mxu0 0.0
        %1055 = vmatprep.subr.mxu0 0.0
        %1056 = vmatpush2.msra.mxu0 0.0
        %1057 = vmatprep.subr.mxu0 0.0
        %1058 = vmatpush2.msra.mxu0 0.0
        %1059 = vmatprep.subr.mxu0 0.0
        %1060 = vmatpush2.msra.mxu0 0.0
        %1061 = vmatprep.subr.mxu0 0.0
        %1062 = vmatpush2.msra.mxu0 0.0
        %1063 = vmatprep.subr.mxu0 0.0
        %1064 = vmatpush2.msra.mxu0 0.0
        %1065 = vmatprep.subr.mxu0 0.0
        %1066 = vmatpush2.msra.mxu0 0.0
        %1067 = vmatprep.subr.mxu0 0.0
        %1068 = vmatpush2.msra.mxu0 0.0
        %1069 = vmatprep.subr.mxu0 0.0
        %1070 = vmatpush2.msra.mxu0 0.0
        %1071 = vmatprep.subr.mxu0 0.0
        %1072 = vmatpush2.msra.mxu0 0.0
        %1073 = vmatprep.subr.mxu0 0.0
        %1074 = vmatpush2.msra.mxu0 0.0
        %1075 = vmatprep.subr.mxu0 0.0
        %1076 = vmatpush2.msra.mxu0 0.0
        %1077 = vmatprep.mubr.f32.mxu0 0.0
        %1078 = vmatmul.mubr.f32.gmra.mxu0 %v849
        %v1079 = vpop.f32.mrf.mxu0
        %v1080 = vadd.f32 %v1002, %v1079
        %v1081 = vpop.f32.mrf.mxu0
        %1082 = vmatprep.mubr.f32.mxu0 0.0
        %1083 = vmatmul.mubr.f32.gmra.mxu0 %v852
        %v1084 = vpop.f32.mrf.mxu0
        %v1085 = vadd.f32 %v1007, %v1084
        %v1086 = vpop.f32.mrf.mxu0
        %1087 = vdwg.mxu0
        %v1089 = vsel %vm769, %v418, 0
        %1091 = vmatprep.subr.mxu0 0.0
        %1092 = vmatpush1.msra.mxu0 0.0
        %1093 = vmatprep.subr.mxu0 0.0
        %1094 = vmatpush1.msra.mxu0 0.0
        %1095 = vmatprep.subr.mxu0 0.0
        %1096 = vmatpush1.msra.mxu0 0.0
        %1097 = vmatprep.subr.mxu0 0.0
        %1098 = vmatpush1.msra.mxu0 0.0
        %1099 = vmatprep.subr.mxu0 0.0
        %1100 = vmatpush1.msra.mxu0 0.0
        %1101 = vmatprep.subr.mxu0 0.0
        %1102 = vmatpush1.msra.mxu0 0.0
        %1103 = vmatprep.subr.mxu0 0.0
        %1104 = vmatpush1.msra.mxu0 0.0
        %1105 = vmatprep.subr.mxu0 0.0
        %1106 = vmatpush1.msra.mxu0 0.0
        %1107 = vmatprep.subr.mxu0 0.0
        %1108 = vmatpush1.msra.mxu0 0.0
        %1109 = vmatprep.subr.mxu0 0.0
        %1110 = vmatpush1.msra.mxu0 0.0
        %1111 = vmatprep.subr.mxu0 0.0
        %1112 = vmatpush1.msra.mxu0 0.0
        %1113 = vmatprep.subr.mxu0 0.0
        %1114 = vmatpush1.msra.mxu0 %v1089
        %1115 = vmatprep.subr.mxu0 0.0
        %1116 = vmatpush1.msra.mxu0 %v417
        %1117 = vmatprep.subr.mxu0 0.0
        %1118 = vmatpush1.msra.mxu0 %v416
        %1119 = vmatprep.subr.mxu0 0.0
        %1120 = vmatpush1.msra.mxu0 %v415
        %1121 = vmatprep.subr.mxu0 0.0
        %1122 = vmatpush1.msra.mxu0 %v414
        %1123 = vmatprep.subr.mxu0 0.0
        %1124 = vmatpush2.msra.mxu0 0.0
        %1125 = vmatprep.subr.mxu0 0.0
        %1126 = vmatpush2.msra.mxu0 0.0
        %1127 = vmatprep.subr.mxu0 0.0
        %1128 = vmatpush2.msra.mxu0 0.0
        %1129 = vmatprep.subr.mxu0 0.0
        %1130 = vmatpush2.msra.mxu0 0.0
        %1131 = vmatprep.subr.mxu0 0.0
        %1132 = vmatpush2.msra.mxu0 0.0
        %1133 = vmatprep.subr.mxu0 0.0
        %1134 = vmatpush2.msra.mxu0 0.0
        %1135 = vmatprep.subr.mxu0 0.0
        %1136 = vmatpush2.msra.mxu0 0.0
        %1137 = vmatprep.subr.mxu0 0.0
        %1138 = vmatpush2.msra.mxu0 0.0
        %1139 = vmatprep.subr.mxu0 0.0
        %1140 = vmatpush2.msra.mxu0 0.0
        %1141 = vmatprep.subr.mxu0 0.0
        %1142 = vmatpush2.msra.mxu0 0.0
        %1143 = vmatprep.subr.mxu0 0.0
        %1144 = vmatpush2.msra.mxu0 0.0
        %1145 = vmatprep.subr.mxu0 0.0
        %1146 = vmatpush2.msra.mxu0 0.0
        %1147 = vmatprep.subr.mxu0 0.0
        %1148 = vmatpush2.msra.mxu0 0.0
        %1149 = vmatprep.subr.mxu0 0.0
        %1150 = vmatpush2.msra.mxu0 0.0
        %1151 = vmatprep.subr.mxu0 0.0
        %1152 = vmatpush2.msra.mxu0 0.0
        %1153 = vmatprep.subr.mxu0 0.0
        %1154 = vmatpush2.msra.mxu0 0.0
        %1155 = vmatprep.mubr.f32.mxu0 0.0
        %1156 = vmatmul.mubr.f32.gmra.mxu0 %v764
        %v1157 = vpop.f32.mrf.mxu0
        %v1158 = vadd.f32 0.0, %v1157
        %v1159 = vpop.f32.mrf.mxu0
        %1160 = vmatprep.mubr.f32.mxu0 0.0
        %1161 = vmatmul.mubr.f32.gmra.mxu0 %v767
        %v1162 = vpop.f32.mrf.mxu0
        %v1163 = vadd.f32 0.0, %v1162
        %v1164 = vpop.f32.mrf.mxu0
        %1165 = vdwg.mxu0
        %v1167 = vsel %vm769, %v413, 0
        %1169 = vmatprep.subr.mxu0 0.0
        %1170 = vmatpush1.msra.mxu0 0.0
        %1171 = vmatprep.subr.mxu0 0.0
        %1172 = vmatpush1.msra.mxu0 0.0
        %1173 = vmatprep.subr.mxu0 0.0
        %1174 = vmatpush1.msra.mxu0 0.0
        %1175 = vmatprep.subr.mxu0 0.0
        %1176 = vmatpush1.msra.mxu0 0.0
        %1177 = vmatprep.subr.mxu0 0.0
        %1178 = vmatpush1.msra.mxu0 0.0
        %1179 = vmatprep.subr.mxu0 0.0
        %1180 = vmatpush1.msra.mxu0 0.0
        %1181 = vmatprep.subr.mxu0 0.0
        %1182 = vmatpush1.msra.mxu0 0.0
        %1183 = vmatprep.subr.mxu0 0.0
        %1184 = vmatpush1.msra.mxu0 0.0
        %1185 = vmatprep.subr.mxu0 0.0
        %1186 = vmatpush1.msra.mxu0 0.0
        %1187 = vmatprep.subr.mxu0 0.0
        %1188 = vmatpush1.msra.mxu0 0.0
        %1189 = vmatprep.subr.mxu0 0.0
        %1190 = vmatpush1.msra.mxu0 0.0
        %1191 = vmatprep.subr.mxu0 0.0
        %1192 = vmatpush1.msra.mxu0 %v1167
        %1193 = vmatprep.subr.mxu0 0.0
        %1194 = vmatpush1.msra.mxu0 %v412
        %1195 = vmatprep.subr.mxu0 0.0
        %1196 = vmatpush1.msra.mxu0 %v411
        %1197 = vmatprep.subr.mxu0 0.0
        %1198 = vmatpush1.msra.mxu0 %v410
        %1199 = vmatprep.subr.mxu0 0.0
        %1200 = vmatpush1.msra.mxu0 %v409
        %1201 = vmatprep.subr.mxu0 0.0
        %1202 = vmatpush2.msra.mxu0 0.0
        %1203 = vmatprep.subr.mxu0 0.0
        %1204 = vmatpush2.msra.mxu0 0.0
        %1205 = vmatprep.subr.mxu0 0.0
        %1206 = vmatpush2.msra.mxu0 0.0
        %1207 = vmatprep.subr.mxu0 0.0
        %1208 = vmatpush2.msra.mxu0 0.0
        %1209 = vmatprep.subr.mxu0 0.0
        %1210 = vmatpush2.msra.mxu0 0.0
        %1211 = vmatprep.subr.mxu0 0.0
        %1212 = vmatpush2.msra.mxu0 0.0
        %1213 = vmatprep.subr.mxu0 0.0
        %1214 = vmatpush2.msra.mxu0 0.0
        %1215 = vmatprep.subr.mxu0 0.0
        %1216 = vmatpush2.msra.mxu0 0.0
        %1217 = vmatprep.subr.mxu0 0.0
        %1218 = vmatpush2.msra.mxu0 0.0
        %1219 = vmatprep.subr.mxu0 0.0
        %1220 = vmatpush2.msra.mxu0 0.0
        %1221 = vmatprep.subr.mxu0 0.0
        %1222 = vmatpush2.msra.mxu0 0.0
        %1223 = vmatprep.subr.mxu0 0.0
        %1224 = vmatpush2.msra.mxu0 0.0
        %1225 = vmatprep.subr.mxu0 0.0
        %1226 = vmatpush2.msra.mxu0 0.0
        %1227 = vmatprep.subr.mxu0 0.0
        %1228 = vmatpush2.msra.mxu0 0.0
        %1229 = vmatprep.subr.mxu0 0.0
        %1230 = vmatpush2.msra.mxu0 0.0
        %1231 = vmatprep.subr.mxu0 0.0
        %1232 = vmatpush2.msra.mxu0 0.0
        %1233 = vmatprep.mubr.f32.mxu0 0.0
        %1234 = vmatmul.mubr.f32.gmra.mxu0 %v849
        %v1235 = vpop.f32.mrf.mxu0
        %v1236 = vadd.f32 %v1158, %v1235
        %v1237 = vpop.f32.mrf.mxu0
        %1238 = vmatprep.mubr.f32.mxu0 0.0
        %1239 = vmatmul.mubr.f32.gmra.mxu0 %v852
        %v1240 = vpop.f32.mrf.mxu0
        %v1241 = vadd.f32 %v1163, %v1240
        %v1242 = vpop.f32.mrf.mxu0
        %1243 = vdwg.mxu0
        %1244 = vrot.lane.b32.xlu0 %v515, 112
        %v1245 = vpop.permute.xlu0 %1244
        %1246 = vrot.lane.b32.xlu0 %v520, 112
        %v1247 = vpop.permute.xlu0 %1246
        %v1248 = vsel %vm441, %v1245, 0
        %v1250 = vsel %vm441, %v1247, 0
        %1252 = vmatprep.subr.mxu0 0.0
        %1253 = vmatpush1.msra.mxu0 0.0
        %1254 = vmatprep.subr.mxu0 0.0
        %1255 = vmatpush1.msra.mxu0 0.0
        %1256 = vmatprep.subr.mxu0 0.0
        %1257 = vmatpush1.msra.mxu0 0.0
        %1258 = vmatprep.subr.mxu0 0.0
        %1259 = vmatpush1.msra.mxu0 0.0
        %1260 = vmatprep.subr.mxu0 0.0
        %1261 = vmatpush1.msra.mxu0 0.0
        %1262 = vmatprep.subr.mxu0 0.0
        %1263 = vmatpush1.msra.mxu0 0.0
        %1264 = vmatprep.subr.mxu0 0.0
        %1265 = vmatpush1.msra.mxu0 0.0
        %1266 = vmatprep.subr.mxu0 0.0
        %1267 = vmatpush1.msra.mxu0 0.0
        %1268 = vmatprep.subr.mxu0 0.0
        %1269 = vmatpush1.msra.mxu0 0.0
        %1270 = vmatprep.subr.mxu0 0.0
        %1271 = vmatpush1.msra.mxu0 0.0
        %1272 = vmatprep.subr.mxu0 0.0
        %1273 = vmatpush1.msra.mxu0 0.0
        %1274 = vmatprep.subr.mxu0 0.0
        %1275 = vmatpush1.msra.mxu0 0.0
        %1276 = vmatprep.subr.mxu0 0.0
        %1277 = vmatpush1.msra.mxu0 0.0
        %1278 = vmatprep.subr.mxu0 0.0
        %1279 = vmatpush1.msra.mxu0 0.0
        %1280 = vmatprep.subr.mxu0 0.0
        %1281 = vmatpush1.msra.mxu0 %v376
        %1282 = vmatprep.subr.mxu0 0.0
        %1283 = vmatpush1.msra.mxu0 %v375
        %1284 = vmatprep.subr.mxu0 0.0
        %1285 = vmatpush2.msra.mxu0 0.0
        %1286 = vmatprep.subr.mxu0 0.0
        %1287 = vmatpush2.msra.mxu0 0.0
        %1288 = vmatprep.subr.mxu0 0.0
        %1289 = vmatpush2.msra.mxu0 0.0
        %1290 = vmatprep.subr.mxu0 0.0
        %1291 = vmatpush2.msra.mxu0 0.0
        %1292 = vmatprep.subr.mxu0 0.0
        %1293 = vmatpush2.msra.mxu0 0.0
        %1294 = vmatprep.subr.mxu0 0.0
        %1295 = vmatpush2.msra.mxu0 0.0
        %1296 = vmatprep.subr.mxu0 0.0
        %1297 = vmatpush2.msra.mxu0 0.0
        %1298 = vmatprep.subr.mxu0 0.0
        %1299 = vmatpush2.msra.mxu0 0.0
        %1300 = vmatprep.subr.mxu0 0.0
        %1301 = vmatpush2.msra.mxu0 0.0
        %1302 = vmatprep.subr.mxu0 0.0
        %1303 = vmatpush2.msra.mxu0 0.0
        %1304 = vmatprep.subr.mxu0 0.0
        %1305 = vmatpush2.msra.mxu0 0.0
        %1306 = vmatprep.subr.mxu0 0.0
        %1307 = vmatpush2.msra.mxu0 0.0
        %1308 = vmatprep.subr.mxu0 0.0
        %1309 = vmatpush2.msra.mxu0 0.0
        %1310 = vmatprep.subr.mxu0 0.0
        %1311 = vmatpush2.msra.mxu0 0.0
        %1312 = vmatprep.subr.mxu0 0.0
        %1313 = vmatpush2.msra.mxu0 0.0
        %1314 = vmatprep.subr.mxu0 0.0
        %1315 = vmatpush2.msra.mxu0 0.0
        %1316 = vmatprep.mubr.f32.mxu0 0.0
        %1317 = vmatmul.mubr.f32.gmra.mxu0 %v1248
        %v1318 = vpop.f32.mrf.mxu0
        %v1319 = vadd.f32 0.0, %v1318
        %v1320 = vpop.f32.mrf.mxu0
        %1321 = vmatprep.mubr.f32.mxu0 0.0
        %1322 = vmatmul.mubr.f32.gmra.mxu0 %v1250
        %v1323 = vpop.f32.mrf.mxu0
        %v1324 = vadd.f32 0.0, %v1323
        %v1325 = vpop.f32.mrf.mxu0
        %1326 = vdwg.mxu0
        %v1328 = vsel %vm762, %v1319, 0
        %v1331 = vsel %vm762, %v1324, 0
        %v1334 = vsel %vm769, %v393, 0
        %1336 = vmatprep.subr.mxu0 0.0
        %1337 = vmatpush1.msra.mxu0 0.0
        %1338 = vmatprep.subr.mxu0 0.0
        %1339 = vmatpush1.msra.mxu0 0.0
        %1340 = vmatprep.subr.mxu0 0.0
        %1341 = vmatpush1.msra.mxu0 0.0
        %1342 = vmatprep.subr.mxu0 0.0
        %1343 = vmatpush1.msra.mxu0 0.0
        %1344 = vmatprep.subr.mxu0 0.0
        %1345 = vmatpush1.msra.mxu0 0.0
        %1346 = vmatprep.subr.mxu0 0.0
        %1347 = vmatpush1.msra.mxu0 0.0
        %1348 = vmatprep.subr.mxu0 0.0
        %1349 = vmatpush1.msra.mxu0 0.0
        %1350 = vmatprep.subr.mxu0 0.0
        %1351 = vmatpush1.msra.mxu0 0.0
        %1352 = vmatprep.subr.mxu0 0.0
        %1353 = vmatpush1.msra.mxu0 0.0
        %1354 = vmatprep.subr.mxu0 0.0
        %1355 = vmatpush1.msra.mxu0 0.0
        %1356 = vmatprep.subr.mxu0 0.0
        %1357 = vmatpush1.msra.mxu0 0.0
        %1358 = vmatprep.subr.mxu0 0.0
        %1359 = vmatpush1.msra.mxu0 %v1334
        %1360 = vmatprep.subr.mxu0 0.0
        %1361 = vmatpush1.msra.mxu0 %v392
        %1362 = vmatprep.subr.mxu0 0.0
        %1363 = vmatpush1.msra.mxu0 %v391
        %1364 = vmatprep.subr.mxu0 0.0
        %1365 = vmatpush1.msra.mxu0 %v390
        %1366 = vmatprep.subr.mxu0 0.0
        %1367 = vmatpush1.msra.mxu0 %v389
        %1368 = vmatprep.subr.mxu0 0.0
        %1369 = vmatpush2.msra.mxu0 0.0
        %1370 = vmatprep.subr.mxu0 0.0
        %1371 = vmatpush2.msra.mxu0 0.0
        %1372 = vmatprep.subr.mxu0 0.0
        %1373 = vmatpush2.msra.mxu0 0.0
        %1374 = vmatprep.subr.mxu0 0.0
        %1375 = vmatpush2.msra.mxu0 0.0
        %1376 = vmatprep.subr.mxu0 0.0
        %1377 = vmatpush2.msra.mxu0 0.0
        %1378 = vmatprep.subr.mxu0 0.0
        %1379 = vmatpush2.msra.mxu0 0.0
        %1380 = vmatprep.subr.mxu0 0.0
        %1381 = vmatpush2.msra.mxu0 0.0
        %1382 = vmatprep.subr.mxu0 0.0
        %1383 = vmatpush2.msra.mxu0 0.0
        %1384 = vmatprep.subr.mxu0 0.0
        %1385 = vmatpush2.msra.mxu0 0.0
        %1386 = vmatprep.subr.mxu0 0.0
        %1387 = vmatpush2.msra.mxu0 0.0
        %1388 = vmatprep.subr.mxu0 0.0
        %1389 = vmatpush2.msra.mxu0 0.0
        %1390 = vmatprep.subr.mxu0 0.0
        %1391 = vmatpush2.msra.mxu0 0.0
        %1392 = vmatprep.subr.mxu0 0.0
        %1393 = vmatpush2.msra.mxu0 0.0
        %1394 = vmatprep.subr.mxu0 0.0
        %1395 = vmatpush2.msra.mxu0 0.0
        %1396 = vmatprep.subr.mxu0 0.0
        %1397 = vmatpush2.msra.mxu0 0.0
        %1398 = vmatprep.subr.mxu0 0.0
        %1399 = vmatpush2.msra.mxu0 0.0
        %1400 = vmatprep.mubr.f32.mxu0 0.0
        %1401 = vmatmul.mubr.f32.gmra.mxu0 %v1328
        %v1402 = vpop.f32.mrf.mxu0
        %v1403 = vadd.f32 0.0, %v1402
        %v1404 = vpop.f32.mrf.mxu0
        %1405 = vmatprep.mubr.f32.mxu0 0.0
        %1406 = vmatmul.mubr.f32.gmra.mxu0 %v1331
        %v1407 = vpop.f32.mrf.mxu0
        %v1408 = vadd.f32 0.0, %v1407
        %v1409 = vpop.f32.mrf.mxu0
        %1410 = vdwg.mxu0
        %v1411 = vadd.f32 %v924, %v1403
        %v1412 = vadd.f32 %v929, %v1408
        %v1414 = vsel %vm769, %v408, 0
        %1416 = vmatprep.subr.mxu0 0.0
        %1417 = vmatpush1.msra.mxu0 0.0
        %1418 = vmatprep.subr.mxu0 0.0
        %1419 = vmatpush1.msra.mxu0 0.0
        %1420 = vmatprep.subr.mxu0 0.0
        %1421 = vmatpush1.msra.mxu0 0.0
        %1422 = vmatprep.subr.mxu0 0.0
        %1423 = vmatpush1.msra.mxu0 0.0
        %1424 = vmatprep.subr.mxu0 0.0
        %1425 = vmatpush1.msra.mxu0 0.0
        %1426 = vmatprep.subr.mxu0 0.0
        %1427 = vmatpush1.msra.mxu0 0.0
        %1428 = vmatprep.subr.mxu0 0.0
        %1429 = vmatpush1.msra.mxu0 0.0
        %1430 = vmatprep.subr.mxu0 0.0
        %1431 = vmatpush1.msra.mxu0 0.0
        %1432 = vmatprep.subr.mxu0 0.0
        %1433 = vmatpush1.msra.mxu0 0.0
        %1434 = vmatprep.subr.mxu0 0.0
        %1435 = vmatpush1.msra.mxu0 0.0
        %1436 = vmatprep.subr.mxu0 0.0
        %1437 = vmatpush1.msra.mxu0 0.0
        %1438 = vmatprep.subr.mxu0 0.0
        %1439 = vmatpush1.msra.mxu0 %v1414
        %1440 = vmatprep.subr.mxu0 0.0
        %1441 = vmatpush1.msra.mxu0 %v407
        %1442 = vmatprep.subr.mxu0 0.0
        %1443 = vmatpush1.msra.mxu0 %v406
        %1444 = vmatprep.subr.mxu0 0.0
        %1445 = vmatpush1.msra.mxu0 %v405
        %1446 = vmatprep.subr.mxu0 0.0
        %1447 = vmatpush1.msra.mxu0 %v404
        %1448 = vmatprep.subr.mxu0 0.0
        %1449 = vmatpush2.msra.mxu0 0.0
        %1450 = vmatprep.subr.mxu0 0.0
        %1451 = vmatpush2.msra.mxu0 0.0
        %1452 = vmatprep.subr.mxu0 0.0
        %1453 = vmatpush2.msra.mxu0 0.0
        %1454 = vmatprep.subr.mxu0 0.0
        %1455 = vmatpush2.msra.mxu0 0.0
        %1456 = vmatprep.subr.mxu0 0.0
        %1457 = vmatpush2.msra.mxu0 0.0
        %1458 = vmatprep.subr.mxu0 0.0
        %1459 = vmatpush2.msra.mxu0 0.0
        %1460 = vmatprep.subr.mxu0 0.0
        %1461 = vmatpush2.msra.mxu0 0.0
        %1462 = vmatprep.subr.mxu0 0.0
        %1463 = vmatpush2.msra.mxu0 0.0
        %1464 = vmatprep.subr.mxu0 0.0
        %1465 = vmatpush2.msra.mxu0 0.0
        %1466 = vmatprep.subr.mxu0 0.0
        %1467 = vmatpush2.msra.mxu0 0.0
        %1468 = vmatprep.subr.mxu0 0.0
        %1469 = vmatpush2.msra.mxu0 0.0
        %1470 = vmatprep.subr.mxu0 0.0
        %1471 = vmatpush2.msra.mxu0 0.0
        %1472 = vmatprep.subr.mxu0 0.0
        %1473 = vmatpush2.msra.mxu0 0.0
        %1474 = vmatprep.subr.mxu0 0.0
        %1475 = vmatpush2.msra.mxu0 0.0
        %1476 = vmatprep.subr.mxu0 0.0
        %1477 = vmatpush2.msra.mxu0 0.0
        %1478 = vmatprep.subr.mxu0 0.0
        %1479 = vmatpush2.msra.mxu0 0.0
        %1480 = vmatprep.mubr.f32.mxu0 0.0
        %1481 = vmatmul.mubr.f32.gmra.mxu0 %v1328
        %v1482 = vpop.f32.mrf.mxu0
        %v1483 = vadd.f32 0.0, %v1482
        %v1484 = vpop.f32.mrf.mxu0
        %1485 = vmatprep.mubr.f32.mxu0 0.0
        %1486 = vmatmul.mubr.f32.gmra.mxu0 %v1331
        %v1487 = vpop.f32.mrf.mxu0
        %v1488 = vadd.f32 0.0, %v1487
        %v1489 = vpop.f32.mrf.mxu0
        %1490 = vdwg.mxu0
        %v1491 = vadd.f32 %v1080, %v1483
        %v1492 = vadd.f32 %v1085, %v1488
        %v1494 = vsel %vm769, %v423, 0
        %1496 = vmatprep.subr.mxu0 0.0
        %1497 = vmatpush1.msra.mxu0 0.0
        %1498 = vmatprep.subr.mxu0 0.0
        %1499 = vmatpush1.msra.mxu0 0.0
        %1500 = vmatprep.subr.mxu0 0.0
        %1501 = vmatpush1.msra.mxu0 0.0
        %1502 = vmatprep.subr.mxu0 0.0
        %1503 = vmatpush1.msra.mxu0 0.0
        %1504 = vmatprep.subr.mxu0 0.0
        %1505 = vmatpush1.msra.mxu0 0.0
        %1506 = vmatprep.subr.mxu0 0.0
        %1507 = vmatpush1.msra.mxu0 0.0
        %1508 = vmatprep.subr.mxu0 0.0
        %1509 = vmatpush1.msra.mxu0 0.0
        %1510 = vmatprep.subr.mxu0 0.0
        %1511 = vmatpush1.msra.mxu0 0.0
        %1512 = vmatprep.subr.mxu0 0.0
        %1513 = vmatpush1.msra.mxu0 0.0
        %1514 = vmatprep.subr.mxu0 0.0
        %1515 = vmatpush1.msra.mxu0 0.0
        %1516 = vmatprep.subr.mxu0 0.0
        %1517 = vmatpush1.msra.mxu0 0.0
        %1518 = vmatprep.subr.mxu0 0.0
        %1519 = vmatpush1.msra.mxu0 %v1494
        %1520 = vmatprep.subr.mxu0 0.0
        %1521 = vmatpush1.msra.mxu0 %v422
        %1522 = vmatprep.subr.mxu0 0.0
        %1523 = vmatpush1.msra.mxu0 %v421
        %1524 = vmatprep.subr.mxu0 0.0
        %1525 = vmatpush1.msra.mxu0 %v420
        %1526 = vmatprep.subr.mxu0 0.0
        %1527 = vmatpush1.msra.mxu0 %v419
        %1528 = vmatprep.subr.mxu0 0.0
        %1529 = vmatpush2.msra.mxu0 0.0
        %1530 = vmatprep.subr.mxu0 0.0
        %1531 = vmatpush2.msra.mxu0 0.0
        %1532 = vmatprep.subr.mxu0 0.0
        %1533 = vmatpush2.msra.mxu0 0.0
        %1534 = vmatprep.subr.mxu0 0.0
        %1535 = vmatpush2.msra.mxu0 0.0
        %1536 = vmatprep.subr.mxu0 0.0
        %1537 = vmatpush2.msra.mxu0 0.0
        %1538 = vmatprep.subr.mxu0 0.0
        %1539 = vmatpush2.msra.mxu0 0.0
        %1540 = vmatprep.subr.mxu0 0.0
        %1541 = vmatpush2.msra.mxu0 0.0
        %1542 = vmatprep.subr.mxu0 0.0
        %1543 = vmatpush2.msra.mxu0 0.0
        %1544 = vmatprep.subr.mxu0 0.0
        %1545 = vmatpush2.msra.mxu0 0.0
        %1546 = vmatprep.subr.mxu0 0.0
        %1547 = vmatpush2.msra.mxu0 0.0
        %1548 = vmatprep.subr.mxu0 0.0
        %1549 = vmatpush2.msra.mxu0 0.0
        %1550 = vmatprep.subr.mxu0 0.0
        %1551 = vmatpush2.msra.mxu0 0.0
        %1552 = vmatprep.subr.mxu0 0.0
        %1553 = vmatpush2.msra.mxu0 0.0
        %1554 = vmatprep.subr.mxu0 0.0
        %1555 = vmatpush2.msra.mxu0 0.0
        %1556 = vmatprep.subr.mxu0 0.0
        %1557 = vmatpush2.msra.mxu0 0.0
        %1558 = vmatprep.subr.mxu0 0.0
        %1559 = vmatpush2.msra.mxu0 0.0
        %1560 = vmatprep.mubr.f32.mxu0 0.0
        %1561 = vmatmul.mubr.f32.gmra.mxu0 %v1328
        %v1562 = vpop.f32.mrf.mxu0
        %v1563 = vadd.f32 0.0, %v1562
        %v1564 = vpop.f32.mrf.mxu0
        %1565 = vmatprep.mubr.f32.mxu0 0.0
        %1566 = vmatmul.mubr.f32.gmra.mxu0 %v1331
        %v1567 = vpop.f32.mrf.mxu0
        %v1568 = vadd.f32 0.0, %v1567
        %v1569 = vpop.f32.mrf.mxu0
        %1570 = vdwg.mxu0
        %v1571 = vadd.f32 %v1236, %v1563
        %v1572 = vadd.f32 %v1241, %v1568
        %v1574 = vlaneseq
        %v1575 = vshrl.u32 %v1574, 7
        %v1576 = vsub.s32 0, %v1575
        %v1577 = vrot.slane %v436, %v1576
        %v1579 = vadd.f32 %v1411, %v1577
        %v1580 = vadd.f32 %v1412, %v1577
        %v1581 = vxor.u32 %v1579, 2147483648
        %v1582 = vxor.u32 %v1580, 2147483648
        %v1583 = vmul.f32 %v1581, 1.442695
        %v1584 = vpow.pop %v1583
        %v1585 = vmul.f32 %v1582, 1.442695
        %v1586 = vpow.pop %v1585
        %v1587 = vadd.f32 %v1584, 1.0
        %v1588 = vadd.f32 %v1586, 1.0
        %v1589 = vrcp.pop %v1587
        %v1590 = vmul.f32 1.0, %v1589
        %v1591 = vrcp.pop %v1588
        %v1592 = vmul.f32 1.0, %v1591
        %v1594 = vlaneseq
        %v1595 = vshrl.u32 %v1594, 7
        %v1596 = vsub.s32 0, %v1595
        %v1597 = vrot.slane %v437, %v1596
        %v1599 = vadd.f32 %v1491, %v1597
        %v1600 = vadd.f32 %v1492, %v1597
        %v1601 = vxor.u32 %v1599, 2147483648
        %v1602 = vxor.u32 %v1600, 2147483648
        %v1603 = vmul.f32 %v1601, 1.442695
        %v1604 = vpow.pop %v1603
        %v1605 = vmul.f32 %v1602, 1.442695
        %v1606 = vpow.pop %v1605
        %v1607 = vadd.f32 %v1604, 1.0
        %v1608 = vadd.f32 %v1606, 1.0
        %v1609 = vrcp.pop %v1607
        %v1610 = vmul.f32 1.0, %v1609
        %v1611 = vrcp.pop %v1608
        %v1612 = vmul.f32 1.0, %v1611
        %v1613 = vmul.f32 %v1610, %v377
        %v1614 = vmul.f32 %v1612, %v378
        %1615 = vmatprep.subr.mxu0 0.0
        %1616 = vmatpush1.msra.mxu0 0.0
        %1617 = vmatprep.subr.mxu0 0.0
        %1618 = vmatpush1.msra.mxu0 0.0
        %1619 = vmatprep.subr.mxu0 0.0
        %1620 = vmatpush1.msra.mxu0 0.0
        %1621 = vmatprep.subr.mxu0 0.0
        %1622 = vmatpush1.msra.mxu0 0.0
        %1623 = vmatprep.subr.mxu0 0.0
        %1624 = vmatpush1.msra.mxu0 0.0
        %1625 = vmatprep.subr.mxu0 0.0
        %1626 = vmatpush1.msra.mxu0 0.0
        %1627 = vmatprep.subr.mxu0 0.0
        %1628 = vmatpush1.msra.mxu0 0.0
        %1629 = vmatprep.subr.mxu0 0.0
        %1630 = vmatpush1.msra.mxu0 0.0
        %1631 = vmatprep.subr.mxu0 0.0
        %1632 = vmatpush1.msra.mxu0 0.0
        %1633 = vmatprep.subr.mxu0 0.0
        %1634 = vmatpush1.msra.mxu0 0.0
        %1635 = vmatprep.subr.mxu0 0.0
        %1636 = vmatpush1.msra.mxu0 0.0
        %1637 = vmatprep.subr.mxu0 0.0
        %1638 = vmatpush1.msra.mxu0 0.0
        %1639 = vmatprep.subr.mxu0 0.0
        %1640 = vmatpush1.msra.mxu0 0.0
        %1641 = vmatprep.subr.mxu0 0.0
        %1642 = vmatpush1.msra.mxu0 0.0
        %1643 = vmatprep.subr.mxu0 0.0
        %1644 = vmatpush1.msra.mxu0 %v1614
        %1645 = vmatprep.subr.mxu0 0.0
        %1646 = vmatpush1.msra.mxu0 %v1613
        %1647 = vmatprep.subr.mxu0 0.0
        %1648 = vmatpush2.msra.mxu0 0.0
        %1649 = vmatprep.subr.mxu0 0.0
        %1650 = vmatpush2.msra.mxu0 0.0
        %1651 = vmatprep.subr.mxu0 0.0
        %1652 = vmatpush2.msra.mxu0 0.0
        %1653 = vmatprep.subr.mxu0 0.0
        %1654 = vmatpush2.msra.mxu0 0.0
        %1655 = vmatprep.subr.mxu0 0.0
        %1656 = vmatpush2.msra.mxu0 0.0
        %1657 = vmatprep.subr.mxu0 0.0
        %1658 = vmatpush2.msra.mxu0 0.0
        %1659 = vmatprep.subr.mxu0 0.0
        %1660 = vmatpush2.msra.mxu0 0.0
        %1661 = vmatprep.subr.mxu0 0.0
        %1662 = vmatpush2.msra.mxu0 0.0
        %1663 = vmatprep.subr.mxu0 0.0
        %1664 = vmatpush2.msra.mxu0 0.0
        %1665 = vmatprep.subr.mxu0 0.0
        %1666 = vmatpush2.msra.mxu0 0.0
        %1667 = vmatprep.subr.mxu0 0.0
        %1668 = vmatpush2.msra.mxu0 0.0
        %1669 = vmatprep.subr.mxu0 0.0
        %1670 = vmatpush2.msra.mxu0 0.0
        %1671 = vmatprep.subr.mxu0 0.0
        %1672 = vmatpush2.msra.mxu0 0.0
        %1673 = vmatprep.subr.mxu0 0.0
        %1674 = vmatpush2.msra.mxu0 0.0
        %1675 = vmatprep.subr.mxu0 0.0
        %1676 = vmatpush2.msra.mxu0 0.0
        %1677 = vmatprep.subr.mxu0 0.0
        %1678 = vmatpush2.msra.mxu0 0.0
        %1679 = vmatprep.mubr.f32.mxu0 0.0
        %1680 = vmatmul.mubr.f32.gmra.mxu0 %v601
        %v1681 = vpop.f32.mrf.mxu0
        %v1682 = vadd.f32 0.0, %v1681
        %v1683 = vpop.f32.mrf.mxu0
        %1684 = vmatprep.mubr.f32.mxu0 0.0
        %1685 = vmatmul.mubr.f32.gmra.mxu0 %v604
        %v1686 = vpop.f32.mrf.mxu0
        %v1687 = vadd.f32 0.0, %v1686
        %v1688 = vpop.f32.mrf.mxu0
        %1689 = vdwg.mxu0
        %vm1690 = vcmask 261120
        %v1692 = vsel %vm1690, %v1682, 0
        %v1695 = vsel %vm1690, %v1687, 0
        %1697 = vmatprep.subr.mxu0 0.0
        %1698 = vmatpush1.msra.mxu0 0.0
        %1699 = vmatprep.subr.mxu0 0.0
        %1700 = vmatpush1.msra.mxu0 0.0
        %1701 = vmatprep.subr.mxu0 0.0
        %1702 = vmatpush1.msra.mxu0 0.0
        %1703 = vmatprep.subr.mxu0 0.0
        %1704 = vmatpush1.msra.mxu0 0.0
        %1705 = vmatprep.subr.mxu0 0.0
        %1706 = vmatpush1.msra.mxu0 0.0
        %1707 = vmatprep.subr.mxu0 0.0
        %1708 = vmatpush1.msra.mxu0 0.0
        %1709 = vmatprep.subr.mxu0 0.0
        %1710 = vmatpush1.msra.mxu0 0.0
        %1711 = vmatprep.subr.mxu0 0.0
        %1712 = vmatpush1.msra.mxu0 0.0
        %1713 = vmatprep.subr.mxu0 0.0
        %1714 = vmatpush1.msra.mxu0 0.0
        %1715 = vmatprep.subr.mxu0 0.0
        %1716 = vmatpush1.msra.mxu0 0.0
        %1717 = vmatprep.subr.mxu0 0.0
        %1718 = vmatpush1.msra.mxu0 0.0
        %1719 = vmatprep.subr.mxu0 0.0
        %1720 = vmatpush1.msra.mxu0 0.0
        %1721 = vmatprep.subr.mxu0 0.0
        %1722 = vmatpush1.msra.mxu0 %v427
        %1723 = vmatprep.subr.mxu0 0.0
        %1724 = vmatpush1.msra.mxu0 %v426
        %1725 = vmatprep.subr.mxu0 0.0
        %1726 = vmatpush1.msra.mxu0 %v425
        %1727 = vmatprep.subr.mxu0 0.0
        %1728 = vmatpush1.msra.mxu0 %v424
        %1729 = vmatprep.subr.mxu0 0.0
        %1730 = vmatpush2.msra.mxu0 0.0
        %1731 = vmatprep.subr.mxu0 0.0
        %1732 = vmatpush2.msra.mxu0 0.0
        %1733 = vmatprep.subr.mxu0 0.0
        %1734 = vmatpush2.msra.mxu0 0.0
        %1735 = vmatprep.subr.mxu0 0.0
        %1736 = vmatpush2.msra.mxu0 0.0
        %1737 = vmatprep.subr.mxu0 0.0
        %1738 = vmatpush2.msra.mxu0 0.0
        %1739 = vmatprep.subr.mxu0 0.0
        %1740 = vmatpush2.msra.mxu0 0.0
        %1741 = vmatprep.subr.mxu0 0.0
        %1742 = vmatpush2.msra.mxu0 0.0
        %1743 = vmatprep.subr.mxu0 0.0
        %1744 = vmatpush2.msra.mxu0 0.0
        %1745 = vmatprep.subr.mxu0 0.0
        %1746 = vmatpush2.msra.mxu0 0.0
        %1747 = vmatprep.subr.mxu0 0.0
        %1748 = vmatpush2.msra.mxu0 0.0
        %1749 = vmatprep.subr.mxu0 0.0
        %1750 = vmatpush2.msra.mxu0 0.0
        %1751 = vmatprep.subr.mxu0 0.0
        %1752 = vmatpush2.msra.mxu0 0.0
        %1753 = vmatprep.subr.mxu0 0.0
        %1754 = vmatpush2.msra.mxu0 0.0
        %1755 = vmatprep.subr.mxu0 0.0
        %1756 = vmatpush2.msra.mxu0 0.0
        %1757 = vmatprep.subr.mxu0 0.0
        %1758 = vmatpush2.msra.mxu0 0.0
        %1759 = vmatprep.subr.mxu0 0.0
        %1760 = vmatpush2.msra.mxu0 0.0
        %1761 = vmatprep.mubr.f32.mxu0 0.0
        %1762 = vmatmul.mubr.f32.gmra.mxu0 %v1692
        %v1763 = vpop.f32.mrf.mxu0
        %v1764 = vadd.f32 0.0, %v1763
        %v1765 = vpop.f32.mrf.mxu0
        %1766 = vmatprep.mubr.f32.mxu0 0.0
        %1767 = vmatmul.mubr.f32.gmra.mxu0 %v1695
        %v1768 = vpop.f32.mrf.mxu0
        %v1769 = vadd.f32 0.0, %v1768
        %v1770 = vpop.f32.mrf.mxu0
        %1771 = vdwg.mxu0
        %v1772 = vadd.f32 %v1571, %v1764
        %v1773 = vadd.f32 %v1572, %v1769
        %1774 = vmatprep.subr.mxu0 0.0
        %1775 = vmatpush1.msra.mxu0 0.0
        %1776 = vmatprep.subr.mxu0 0.0
        %1777 = vmatpush1.msra.mxu0 0.0
        %1778 = vmatprep.subr.mxu0 0.0
        %1779 = vmatpush1.msra.mxu0 0.0
        %1780 = vmatprep.subr.mxu0 0.0
        %1781 = vmatpush1.msra.mxu0 0.0
        %1782 = vmatprep.subr.mxu0 0.0
        %1783 = vmatpush1.msra.mxu0 0.0
        %1784 = vmatprep.subr.mxu0 0.0
        %1785 = vmatpush1.msra.mxu0 0.0
        %1786 = vmatprep.subr.mxu0 0.0
        %1787 = vmatpush1.msra.mxu0 0.0
        %1788 = vmatprep.subr.mxu0 0.0
        %1789 = vmatpush1.msra.mxu0 0.0
        %1790 = vmatprep.subr.mxu0 0.0
        %1791 = vmatpush1.msra.mxu0 0.0
        %1792 = vmatprep.subr.mxu0 0.0
        %1793 = vmatpush1.msra.mxu0 0.0
        %1794 = vmatprep.subr.mxu0 0.0
        %1795 = vmatpush1.msra.mxu0 0.0
        %1796 = vmatprep.subr.mxu0 0.0
        %1797 = vmatpush1.msra.mxu0 0.0
        %1798 = vmatprep.subr.mxu0 0.0
        %1799 = vmatpush1.msra.mxu0 0.0
        %1800 = vmatprep.subr.mxu0 0.0
        %1801 = vmatpush1.msra.mxu0 0.0
        %1802 = vmatprep.subr.mxu0 0.0
        %1803 = vmatpush1.msra.mxu0 %v1614
        %1804 = vmatprep.subr.mxu0 0.0
        %1805 = vmatpush1.msra.mxu0 %v1613
        %1806 = vmatprep.subr.mxu0 0.0
        %1807 = vmatpush2.msra.mxu0 0.0
        %1808 = vmatprep.subr.mxu0 0.0
        %1809 = vmatpush2.msra.mxu0 0.0
        %1810 = vmatprep.subr.mxu0 0.0
        %1811 = vmatpush2.msra.mxu0 0.0
        %1812 = vmatprep.subr.mxu0 0.0
        %1813 = vmatpush2.msra.mxu0 0.0
        %1814 = vmatprep.subr.mxu0 0.0
        %1815 = vmatpush2.msra.mxu0 0.0
        %1816 = vmatprep.subr.mxu0 0.0
        %1817 = vmatpush2.msra.mxu0 0.0
        %1818 = vmatprep.subr.mxu0 0.0
        %1819 = vmatpush2.msra.mxu0 0.0
        %1820 = vmatprep.subr.mxu0 0.0
        %1821 = vmatpush2.msra.mxu0 0.0
        %1822 = vmatprep.subr.mxu0 0.0
        %1823 = vmatpush2.msra.mxu0 0.0
        %1824 = vmatprep.subr.mxu0 0.0
        %1825 = vmatpush2.msra.mxu0 0.0
        %1826 = vmatprep.subr.mxu0 0.0
        %1827 = vmatpush2.msra.mxu0 0.0
        %1828 = vmatprep.subr.mxu0 0.0
        %1829 = vmatpush2.msra.mxu0 0.0
        %1830 = vmatprep.subr.mxu0 0.0
        %1831 = vmatpush2.msra.mxu0 0.0
        %1832 = vmatprep.subr.mxu0 0.0
        %1833 = vmatpush2.msra.mxu0 0.0
        %1834 = vmatprep.subr.mxu0 0.0
        %1835 = vmatpush2.msra.mxu0 0.0
        %1836 = vmatprep.subr.mxu0 0.0
        %1837 = vmatpush2.msra.mxu0 0.0
        %1838 = vmatprep.mubr.f32.mxu0 0.0
        %1839 = vmatmul.mubr.f32.gmra.mxu0 %v682
        %v1840 = vpop.f32.mrf.mxu0
        %v1841 = vadd.f32 0.0, %v1840
        %v1842 = vpop.f32.mrf.mxu0
        %1843 = vmatprep.mubr.f32.mxu0 0.0
        %1844 = vmatmul.mubr.f32.gmra.mxu0 %v685
        %v1845 = vpop.f32.mrf.mxu0
        %v1846 = vadd.f32 0.0, %v1845
        %v1847 = vpop.f32.mrf.mxu0
        %1848 = vdwg.mxu0
        %v1850 = vsel %vm1690, %v1841, 0
        %v1853 = vsel %vm1690, %v1846, 0
        %1855 = vmatprep.subr.mxu0 0.0
        %1856 = vmatpush1.msra.mxu0 0.0
        %1857 = vmatprep.subr.mxu0 0.0
        %1858 = vmatpush1.msra.mxu0 0.0
        %1859 = vmatprep.subr.mxu0 0.0
        %1860 = vmatpush1.msra.mxu0 0.0
        %1861 = vmatprep.subr.mxu0 0.0
        %1862 = vmatpush1.msra.mxu0 0.0
        %1863 = vmatprep.subr.mxu0 0.0
        %1864 = vmatpush1.msra.mxu0 0.0
        %1865 = vmatprep.subr.mxu0 0.0
        %1866 = vmatpush1.msra.mxu0 0.0
        %1867 = vmatprep.subr.mxu0 0.0
        %1868 = vmatpush1.msra.mxu0 0.0
        %1869 = vmatprep.subr.mxu0 0.0
        %1870 = vmatpush1.msra.mxu0 0.0
        %1871 = vmatprep.subr.mxu0 0.0
        %1872 = vmatpush1.msra.mxu0 0.0
        %1873 = vmatprep.subr.mxu0 0.0
        %1874 = vmatpush1.msra.mxu0 0.0
        %1875 = vmatprep.subr.mxu0 0.0
        %1876 = vmatpush1.msra.mxu0 0.0
        %1877 = vmatprep.subr.mxu0 0.0
        %1878 = vmatpush1.msra.mxu0 0.0
        %1879 = vmatprep.subr.mxu0 0.0
        %1880 = vmatpush1.msra.mxu0 %v431
        %1881 = vmatprep.subr.mxu0 0.0
        %1882 = vmatpush1.msra.mxu0 %v430
        %1883 = vmatprep.subr.mxu0 0.0
        %1884 = vmatpush1.msra.mxu0 %v429
        %1885 = vmatprep.subr.mxu0 0.0
        %1886 = vmatpush1.msra.mxu0 %v428
        %1887 = vmatprep.subr.mxu0 0.0
        %1888 = vmatpush2.msra.mxu0 0.0
        %1889 = vmatprep.subr.mxu0 0.0
        %1890 = vmatpush2.msra.mxu0 0.0
        %1891 = vmatprep.subr.mxu0 0.0
        %1892 = vmatpush2.msra.mxu0 0.0
        %1893 = vmatprep.subr.mxu0 0.0
        %1894 = vmatpush2.msra.mxu0 0.0
        %1895 = vmatprep.subr.mxu0 0.0
        %1896 = vmatpush2.msra.mxu0 0.0
        %1897 = vmatprep.subr.mxu0 0.0
        %1898 = vmatpush2.msra.mxu0 0.0
        %1899 = vmatprep.subr.mxu0 0.0
        %1900 = vmatpush2.msra.mxu0 0.0
        %1901 = vmatprep.subr.mxu0 0.0
        %1902 = vmatpush2.msra.mxu0 0.0
        %1903 = vmatprep.subr.mxu0 0.0
        %1904 = vmatpush2.msra.mxu0 0.0
        %1905 = vmatprep.subr.mxu0 0.0
        %1906 = vmatpush2.msra.mxu0 0.0
        %1907 = vmatprep.subr.mxu0 0.0
        %1908 = vmatpush2.msra.mxu0 0.0
        %1909 = vmatprep.subr.mxu0 0.0
        %1910 = vmatpush2.msra.mxu0 0.0
        %1911 = vmatprep.subr.mxu0 0.0
        %1912 = vmatpush2.msra.mxu0 0.0
        %1913 = vmatprep.subr.mxu0 0.0
        %1914 = vmatpush2.msra.mxu0 0.0
        %1915 = vmatprep.subr.mxu0 0.0
        %1916 = vmatpush2.msra.mxu0 0.0
        %1917 = vmatprep.subr.mxu0 0.0
        %1918 = vmatpush2.msra.mxu0 0.0
        %1919 = vmatprep.mubr.f32.mxu0 0.0
        %1920 = vmatmul.mubr.f32.gmra.mxu0 %v1850
        %v1921 = vpop.f32.mrf.mxu0
        %v1922 = vadd.f32 0.0, %v1921
        %v1923 = vpop.f32.mrf.mxu0
        %1924 = vmatprep.mubr.f32.mxu0 0.0
        %1925 = vmatmul.mubr.f32.gmra.mxu0 %v1853
        %v1926 = vpop.f32.mrf.mxu0
        %v1927 = vadd.f32 0.0, %v1926
        %v1928 = vpop.f32.mrf.mxu0
        %1929 = vdwg.mxu0
        %v1930 = vadd.f32 %v1772, %v1922
        %v1931 = vadd.f32 %v1773, %v1927
        %1932 = vmatprep.subr.mxu0 0.0
        %1933 = vmatpush1.msra.mxu0 0.0
        %1934 = vmatprep.subr.mxu0 0.0
        %1935 = vmatpush1.msra.mxu0 0.0
        %1936 = vmatprep.subr.mxu0 0.0
        %1937 = vmatpush1.msra.mxu0 0.0
        %1938 = vmatprep.subr.mxu0 0.0
        %1939 = vmatpush1.msra.mxu0 0.0
        %1940 = vmatprep.subr.mxu0 0.0
        %1941 = vmatpush1.msra.mxu0 0.0
        %1942 = vmatprep.subr.mxu0 0.0
        %1943 = vmatpush1.msra.mxu0 0.0
        %1944 = vmatprep.subr.mxu0 0.0
        %1945 = vmatpush1.msra.mxu0 0.0
        %1946 = vmatprep.subr.mxu0 0.0
        %1947 = vmatpush1.msra.mxu0 0.0
        %1948 = vmatprep.subr.mxu0 0.0
        %1949 = vmatpush1.msra.mxu0 0.0
        %1950 = vmatprep.subr.mxu0 0.0
        %1951 = vmatpush1.msra.mxu0 0.0
        %1952 = vmatprep.subr.mxu0 0.0
        %1953 = vmatpush1.msra.mxu0 0.0
        %1954 = vmatprep.subr.mxu0 0.0
        %1955 = vmatpush1.msra.mxu0 0.0
        %1956 = vmatprep.subr.mxu0 0.0
        %1957 = vmatpush1.msra.mxu0 0.0
        %1958 = vmatprep.subr.mxu0 0.0
        %1959 = vmatpush1.msra.mxu0 0.0
        %1960 = vmatprep.subr.mxu0 0.0
        %1961 = vmatpush1.msra.mxu0 %v1614
        %1962 = vmatprep.subr.mxu0 0.0
        %1963 = vmatpush1.msra.mxu0 %v1613
        %1964 = vmatprep.subr.mxu0 0.0
        %1965 = vmatpush2.msra.mxu0 0.0
        %1966 = vmatprep.subr.mxu0 0.0
        %1967 = vmatpush2.msra.mxu0 0.0
        %1968 = vmatprep.subr.mxu0 0.0
        %1969 = vmatpush2.msra.mxu0 0.0
        %1970 = vmatprep.subr.mxu0 0.0
        %1971 = vmatpush2.msra.mxu0 0.0
        %1972 = vmatprep.subr.mxu0 0.0
        %1973 = vmatpush2.msra.mxu0 0.0
        %1974 = vmatprep.subr.mxu0 0.0
        %1975 = vmatpush2.msra.mxu0 0.0
        %1976 = vmatprep.subr.mxu0 0.0
        %1977 = vmatpush2.msra.mxu0 0.0
        %1978 = vmatprep.subr.mxu0 0.0
        %1979 = vmatpush2.msra.mxu0 0.0
        %1980 = vmatprep.subr.mxu0 0.0
        %1981 = vmatpush2.msra.mxu0 0.0
        %1982 = vmatprep.subr.mxu0 0.0
        %1983 = vmatpush2.msra.mxu0 0.0
        %1984 = vmatprep.subr.mxu0 0.0
        %1985 = vmatpush2.msra.mxu0 0.0
        %1986 = vmatprep.subr.mxu0 0.0
        %1987 = vmatpush2.msra.mxu0 0.0
        %1988 = vmatprep.subr.mxu0 0.0
        %1989 = vmatpush2.msra.mxu0 0.0
        %1990 = vmatprep.subr.mxu0 0.0
        %1991 = vmatpush2.msra.mxu0 0.0
        %1992 = vmatprep.subr.mxu0 0.0
        %1993 = vmatpush2.msra.mxu0 0.0
        %1994 = vmatprep.subr.mxu0 0.0
        %1995 = vmatpush2.msra.mxu0 0.0
        %1996 = vmatprep.mubr.f32.mxu0 0.0
        %1997 = vmatmul.mubr.f32.gmra.mxu0 %v1248
        %v1998 = vpop.f32.mrf.mxu0
        %v1999 = vadd.f32 0.0, %v1998
        %v2000 = vpop.f32.mrf.mxu0
        %2001 = vmatprep.mubr.f32.mxu0 0.0
        %2002 = vmatmul.mubr.f32.gmra.mxu0 %v1250
        %v2003 = vpop.f32.mrf.mxu0
        %v2004 = vadd.f32 0.0, %v2003
        %v2005 = vpop.f32.mrf.mxu0
        %2006 = vdwg.mxu0
        %v2008 = vsel %vm1690, %v1999, 0
        %v2011 = vsel %vm1690, %v2004, 0
        %2013 = vmatprep.subr.mxu0 0.0
        %2014 = vmatpush1.msra.mxu0 0.0
        %2015 = vmatprep.subr.mxu0 0.0
        %2016 = vmatpush1.msra.mxu0 0.0
        %2017 = vmatprep.subr.mxu0 0.0
        %2018 = vmatpush1.msra.mxu0 0.0
        %2019 = vmatprep.subr.mxu0 0.0
        %2020 = vmatpush1.msra.mxu0 0.0
        %2021 = vmatprep.subr.mxu0 0.0
        %2022 = vmatpush1.msra.mxu0 0.0
        %2023 = vmatprep.subr.mxu0 0.0
        %2024 = vmatpush1.msra.mxu0 0.0
        %2025 = vmatprep.subr.mxu0 0.0
        %2026 = vmatpush1.msra.mxu0 0.0
        %2027 = vmatprep.subr.mxu0 0.0
        %2028 = vmatpush1.msra.mxu0 0.0
        %2029 = vmatprep.subr.mxu0 0.0
        %2030 = vmatpush1.msra.mxu0 0.0
        %2031 = vmatprep.subr.mxu0 0.0
        %2032 = vmatpush1.msra.mxu0 0.0
        %2033 = vmatprep.subr.mxu0 0.0
        %2034 = vmatpush1.msra.mxu0 0.0
        %2035 = vmatprep.subr.mxu0 0.0
        %2036 = vmatpush1.msra.mxu0 0.0
        %2037 = vmatprep.subr.mxu0 0.0
        %2038 = vmatpush1.msra.mxu0 %v435
        %2039 = vmatprep.subr.mxu0 0.0
        %2040 = vmatpush1.msra.mxu0 %v434
        %2041 = vmatprep.subr.mxu0 0.0
        %2042 = vmatpush1.msra.mxu0 %v433
        %2043 = vmatprep.subr.mxu0 0.0
        %2044 = vmatpush1.msra.mxu0 %v432
        %2045 = vmatprep.subr.mxu0 0.0
        %2046 = vmatpush2.msra.mxu0 0.0
        %2047 = vmatprep.subr.mxu0 0.0
        %2048 = vmatpush2.msra.mxu0 0.0
        %2049 = vmatprep.subr.mxu0 0.0
        %2050 = vmatpush2.msra.mxu0 0.0
        %2051 = vmatprep.subr.mxu0 0.0
        %2052 = vmatpush2.msra.mxu0 0.0
        %2053 = vmatprep.subr.mxu0 0.0
        %2054 = vmatpush2.msra.mxu0 0.0
        %2055 = vmatprep.subr.mxu0 0.0
        %2056 = vmatpush2.msra.mxu0 0.0
        %2057 = vmatprep.subr.mxu0 0.0
        %2058 = vmatpush2.msra.mxu0 0.0
        %2059 = vmatprep.subr.mxu0 0.0
        %2060 = vmatpush2.msra.mxu0 0.0
        %2061 = vmatprep.subr.mxu0 0.0
        %2062 = vmatpush2.msra.mxu0 0.0
        %2063 = vmatprep.subr.mxu0 0.0
        %2064 = vmatpush2.msra.mxu0 0.0
        %2065 = vmatprep.subr.mxu0 0.0
        %2066 = vmatpush2.msra.mxu0 0.0
        %2067 = vmatprep.subr.mxu0 0.0
        %2068 = vmatpush2.msra.mxu0 0.0
        %2069 = vmatprep.subr.mxu0 0.0
        %2070 = vmatpush2.msra.mxu0 0.0
        %2071 = vmatprep.subr.mxu0 0.0
        %2072 = vmatpush2.msra.mxu0 0.0
        %2073 = vmatprep.subr.mxu0 0.0
        %2074 = vmatpush2.msra.mxu0 0.0
        %2075 = vmatprep.subr.mxu0 0.0
        %2076 = vmatpush2.msra.mxu0 0.0
        %2077 = vmatprep.mubr.f32.mxu0 0.0
        %2078 = vmatmul.mubr.f32.gmra.mxu0 %v2008
        %v2079 = vpop.f32.mrf.mxu0
        %v2080 = vadd.f32 0.0, %v2079
        %v2081 = vpop.f32.mrf.mxu0
        %2082 = vmatprep.mubr.f32.mxu0 0.0
        %2083 = vmatmul.mubr.f32.gmra.mxu0 %v2011
        %v2084 = vpop.f32.mrf.mxu0
        %v2085 = vadd.f32 0.0, %v2084
        %v2086 = vpop.f32.mrf.mxu0
        %2087 = vdwg.mxu0
        %v2088 = vadd.f32 %v1930, %v2080
        %v2089 = vadd.f32 %v1931, %v2085
        %v2091 = vlaneseq
        %v2092 = vshrl.u32 %v2091, 7
        %v2093 = vsub.s32 0, %v2092
        %v2094 = vrot.slane %v438, %v2093
        %v2096 = vadd.f32 %v2088, %v2094
        %v2097 = vadd.f32 %v2089, %v2094
        %v2098 = vtanh.pop %v2096
        %v2099 = vtanh.pop %v2097
        %v2100 = vmul.f32 %v1590, %v2098
        %v2101 = vmul.f32 %v1592, %v2099
        %v2102 = vsub.f32 1.0, %v1590
        %v2103 = vsub.f32 1.0, %v1592
        %v2104 = vmul.f32 %v2102, %v377
        %v2105 = vmul.f32 %v2103, %v378
        %v2106 = vadd.f32 %v2100, %v2104
        %v2107 = vadd.f32 %v2101, %v2105
        %2108 = vst.msk [vmem:[%s347] sm:$0xff] %vm1690, %v2106
        %2109 = vst.msk [vmem:[%s347 + $0x8] sm:$0xff] %vm1690, %v2107
        %s2110 = sand.u32 %s218, 1
        %s2111 = scalar_lea.sflag [#allocation3], %s2110
        %s2112 = sand.u32 %s218, 1
        %s2113 = smul.addr %s2112, 16
        %s2114 = scalar_lea.vmem [#allocation2], %s2113
        // Predicated region
        $region53: #{tpu_custom_call.1} parent=51 // pred_check
          %p2115 = pneg %p228
        $region54: #{tpu_custom_call.1} parent=51 // pred_check_branch
          %2117 = sbr.rel (%p2115) target = $region56
        $region55: #{tpu_custom_call.1} parent=51 // pred_region
          %s2118 = smul.u32 2, %s22
          %s2120 = ssub.s32 256, 256
          %2121 = vsyncadd %s2111, %s2120
          %s2122 = smul.addr %s2118, 128
          %s2123 = scalar_lea.hbm %s8, %s2122
          %s2124 = sshll.u32 %s2114, 4
          %s2125 = int_to_ptr.vmem [resolvable:$true] %s2124
          %2130 = dma.vmem_to_hbm [thread:$0]  %s2125, 256, %s2123, %s2111, 128, 128, 8
        $region56: #{tpu_custom_call.1} parent=51 // pred_fallthru
          _
      $region52: #{tpu_custom_call.1} parent=5 // pred_fallthru
        _
      %p2131 = scmp.le.s32.totalorder 2, %s17
      // Predicated region
      $region57: #{tpu_custom_call.1} parent=5 // pred_check
        %p2132 = pneg %p2131
      $region58: #{tpu_custom_call.1} parent=5 // pred_check_branch
        %2134 = sbr.rel (%p2132) target = $region60
      $region59: #{tpu_custom_call.1} parent=5 // pred_region
        %s2135 = ssub.s32 %s17, 2
        // Predicated region
        $region61: #{tpu_custom_call.1} parent=59 // pred_check
          %p2136 = pneg %p234
        $region62: #{tpu_custom_call.1} parent=59 // pred_check_branch
          %2138 = sbr.rel (%p2136) target = $region64
        $region63: #{tpu_custom_call.1} parent=59 // pred_region
          %s2139 = sand.u32 %s219, 1
          %s2140 = scalar_lea.sflag [#allocation3], %s2139
          %s2141 = sand.u32 %s219, 1
          %s2142 = smul.addr %s2141, 16
          %s2143 = scalar_lea.vmem [#allocation2], %s2142
          %2144 = dma.done %s2140, 256
        $region64: #{tpu_custom_call.1} parent=59 // pred_fallthru
          _
      $region60: #{tpu_custom_call.1} parent=5 // pred_fallthru
        _
    $region6: #{tpu_custom_call.1} parent=1 // loop_footer
      %s21 = sadd.s32 1, %s17
    $region7: #{tpu_custom_call.1} parent=1 // loop_footer_branch
      %16 = sbr.rel target = $region3
    $region8: #{tpu_custom_call.1} parent=1 // loop_exit
      _
    %2145 = vsyncpa [#allocation3], 1
    %s2146 = scalar_lea.sflag [#allocation3], 1
    %2147 = vsyncpa %s2146, 1

</llo_original>
